<compile_context>
chip_gen: v5e
topology: v5e:2x2
jax: 0.10.0
libtpu: 0.0.40
codegen_flags: <defaults>
</compile_context>

<pallas_src>
import functools

import jax
import jax.numpy as jnp
from jax.experimental import pallas as pl
from jax.experimental.pallas import tpu as pltpu


DEGREE_LIST = [2]                 # matches MatRotGE(degree_list=[2])
IMG_FEATURE_DIM = 512             # self.img_feature_dim
NUM_HEADS = 1 + len(DEGREE_LIST)  # gazeEs + rotate_gazeEs heads
OUT_PER_HEAD = 2                  # nn.Linear(channel, 2)


# ----------------------------- small helpers --------------------------------

def _round_up(a, m):
    return -(-a // m) * m


def _cdiv(a, b):
    return -(-a // b)


def _largest_divisor_tile(k, max_tile):
    """Largest multiple of 128 that divides `k` and is <= max_tile (k%128==0)."""
    g = k // 128
    d_max = max(1, min(g, max_tile // 128))
    for d in range(d_max, 0, -1):
        if g % d == 0:
            return 128 * d
    return 128


def _padded_block_bytes(shape, dtype):
    """VMEM bytes of a block AFTER lane(128)/sublane padding (the real cost)."""
    itemsize = jnp.dtype(dtype).itemsize
    sublane = max(8, 32 // itemsize)          # 8 (f32), 16 (bf16), 32 (int8)
    dims = list(shape)
    dims[-1] = _round_up(dims[-1], 128)
    if len(dims) >= 2:
        dims[-2] = _round_up(dims[-2], sublane)
    n = 1
    for d in dims:
        n *= d
    return n * itemsize


# ------------------------------- kernel -------------------------------------

def matrot_heads_kernel(x_ref, w_ref, b_ref, o_ref, acc_ref, *, inv_hw):
    """Fused (pool + dropout@eval + multi-head fc) streaming matmul.

    x_ref:   (TN, TK)  zero-copy NCHW features (bf16/f32), K = C*H*W
    w_ref:   (TK, P)   pooling-folded, head-fused fc weights (unscaled)
    b_ref:   (1, P)    fused fc biases (f32)
    o_ref:   (TN, P)   fused head outputs (f32)
    acc_ref: (TN, P)   f32 accumulator scratch (persists across the K grid axis)
    """
    @pl.when(pl.program_id(1) == 0)
    def _():
        acc_ref[...] = jnp.zeros_like(acc_ref)

    acc_ref[...] += jnp.dot(x_ref[...], w_ref[...],
                            preferred_element_type=jnp.float32)

    # Epilogue every step: a tiny VPU multiply/add on the (TN, P) accumulator
    # is free under a DMA-bound matmul; only the last-k value reaches HBM.
    # (1/HW applied here, in f32, instead of being baked into bf16 weights.)
    o_ref[...] = (acc_ref[...] * inv_hw + b_ref[...]).astype(o_ref.dtype)


# ----------------------------- host wrappers ---------------------------------

def prepare_head_params(w_stack, b_stack, spatial_hw, param_dtype=jnp.bfloat16):
    """One-off (model-load time) head fusion.

    w_stack: [NUM_HEADS, 2, C] per-head fc weights (PyTorch layout)
    b_stack: [NUM_HEADS, 2]    per-head fc biases
    Returns (w_big [C*HW, NUM_HEADS*2], b [1, NUM_HEADS*2]).
    Pooling is folded by repeating channel weights across HW; the 1/HW scale
    is NOT folded (applied in-kernel on the f32 accumulator).
    """
    nh, out_per_head, C = w_stack.shape
    P = nh * out_per_head
    w = jnp.transpose(w_stack, (2, 0, 1)).reshape(C, P)                  # (C, P)
    w_big = jnp.broadcast_to(w[:, None, :], (C, spatial_hw, P))
    w_big = w_big.reshape(C * spatial_hw, P).astype(param_dtype)         # (K, P)
    b = b_stack.reshape(1, P).astype(jnp.float32)
    return w_big, b


@jax.jit
def matrot_ge_heads(base_features_nchw, w_big, b):
    """Runs the fused MatRotGE heads on backbone features.

    base_features_nchw: [N, C, H, W]  (bf16 preferred; f32 is cast to bf16)
    w_big:              [C*H*W, NUM_HEADS*2]  from prepare_head_params
    b:                  [1, NUM_HEADS*2]
    Returns (output_gaze [N, 2], {f"out_{d}_gaze": [N, 2]}).
    """
    N, C, H, W = base_features_nchw.shape
    HW = H * W
    K = C * HW
    P = b.shape[-1]
    nh = P // OUT_PER_HEAD

    # Zero-copy flatten of the contiguous NCHW map: [N, C, H, W] -> [N, C*H*W].
    x = base_features_nchw.reshape(N, K)
    # Default to bf16 features: the kernel is HBM-bound on the x stream on
    # v5e/v6e/v7x, so halving its bytes is ~2x end-to-end.  (In deployment the
    # backbone should emit bf16 directly so no extra cast pass is needed.)
    if x.dtype == jnp.float32:
        x = x.astype(jnp.bfloat16)
    x_itemsize = jnp.dtype(x.dtype).itemsize
    w_itemsize = jnp.dtype(w_big.dtype).itemsize

    # ---- batch tile: keep several batch tiles so megacore (v7x) gets work and
    # the input pipeline has depth; small batches use one full-extent tile.
    if N <= 8:
        tn = N
    else:
        tn = min(128, _round_up(N, 8))
        if N >= 32:
            tn = min(tn, _round_up(_cdiv(N, 4), 8))   # aim for >= 4 batch tiles
        tn = min(tn, N)
    grid_n = _cdiv(N, tn)

    # ---- K tile: bound per-step feature DMA (~4 MiB) and the lane-padded
    # weight block; force a K split when there is only one batch tile so the
    # DMA still pipelines (small-N latency case).
    x_step_budget = 4 * 1024 * 1024
    w_block_budget = 8 * 1024 * 1024           # per (lane-padded) weight buffer
    if K % 128 == 0:
        if tn * K * x_itemsize > x_step_budget:
            tk = _largest_divisor_tile(
                K, max(128, x_step_budget // (tn * x_itemsize)))
        else:
            tk = K
        max_tk_w = max(128, w_block_budget // (128 * w_itemsize))
        if tk > max_tk_w:
            tk = min(tk, _largest_divisor_tile(K, max_tk_w))
        if grid_n == 1 and K >= 1024:
            tk = min(tk, _largest_divisor_tile(K, K // 2))
    else:
        tk = K
    grid_k = _cdiv(K, tk)

    # ---- VMEM limit: account for the real (lane/sublane padded) block sizes —
    # a (tk, 4) block lives as (tk, 128) lanes in VMEM, not tk*4 elements.
    vmem_needed = (
        2 * _padded_block_bytes((tn, tk), x.dtype)        # double-buffered x
        + 2 * _padded_block_bytes((tk, P), w_big.dtype)   # weight buffers
        + 2 * _padded_block_bytes((1, P), jnp.float32)    # bias buffers
        + 2 * _padded_block_bytes((tn, P), jnp.float32)   # output buffers
        + _padded_block_bytes((tn, P), jnp.float32)       # accumulator scratch
        + (2 << 20))                                      # headroom
    vmem_limit = int(min(max(vmem_needed, 16 << 20), 64 << 20))

    kernel = functools.partial(matrot_heads_kernel, inv_hw=1.0 / HW)

    out = pl.pallas_call(
        kernel,
        out_shape=jax.ShapeDtypeStruct((N, P), jnp.float32),
        grid=(grid_n, grid_k),
        in_specs=[
            pl.BlockSpec((tn, tk), lambda i, k: (i, k)),   # streamed features
            pl.BlockSpec((tk, P), lambda i, k: (k, 0)),    # weights (resident
                                                           #  when grid_k == 1)
            pl.BlockSpec((1, P), lambda i, k: (0, 0)),     # resident bias
        ],
        out_specs=pl.BlockSpec((tn, P), lambda i, k: (i, 0)),
        scratch_shapes=[pltpu.VMEM((tn, P), jnp.float32)],
        compiler_params=pltpu.CompilerParams(
            dimension_semantics=("parallel", "arbitrary"),  # megacore on batch
            vmem_limit_bytes=vmem_limit),
    )(x, w_big, b)

    out = out.reshape(N, nh, OUT_PER_HEAD)
    output_gaze = out[:, 0, :]
    angular_output = {
        f"out_{d}_gaze": out[:, 1 + i, :] for i, d in enumerate(DEGREE_LIST)
    }
    return output_gaze, angular_output


# ------------------------------- test ----------------------------------------

def _init_params(key):
    """Deterministic fc params, PyTorch nn.Linear-style uniform init."""
    bound = 1.0 / (IMG_FEATURE_DIM ** 0.5)
    kw, kb = jax.random.split(key)
    w_stack = jax.random.uniform(
        kw, (NUM_HEADS, OUT_PER_HEAD, IMG_FEATURE_DIM),
        minval=-bound, maxval=bound, dtype=jnp.float32)
    b_stack = jax.random.uniform(
        kb, (NUM_HEADS, OUT_PER_HEAD),
        minval=-bound, maxval=bound, dtype=jnp.float32)
    return w_stack, b_stack


def _reference(base_features_nchw, w_stack, b_stack,
               feat_dtype=jnp.bfloat16, param_dtype=jnp.bfloat16):
    """Pure-JAX reference (pool -> per-head fc) with the same bf16 quantization
    of inputs/weights the kernel sees, accumulated in f32."""
    x = base_features_nchw.astype(feat_dtype).astype(jnp.float32)
    w = w_stack.astype(param_dtype).astype(jnp.float32)
    pooled = jnp.mean(x, axis=(2, 3))
    return [pooled @ w[h].T + b_stack[h].astype(jnp.float32)
            for h in range(w_stack.shape[0])]


if __name__ == "__main__":
    key = jax.random.PRNGKey(0)
    k_feat, k_params = jax.random.split(key)

    # Small shapes consistent with the module: C must be 512 (Linear(512, 2)).
    N, C, H, W = 2, IMG_FEATURE_DIM, 4, 4
    base_features = jax.random.normal(k_feat, (N, C, H, W), dtype=jnp.float32)
    w_stack, b_stack = _init_params(k_params)

    # One-off head fusion (model-load time), then the jitted fused kernel.
    w_big, b = prepare_head_params(w_stack, b_stack, H * W,
                                   param_dtype=jnp.bfloat16)
    output_gaze, angular_output = matrot_ge_heads(base_features, w_big, b)
    jax.block_until_ready((output_gaze, angular_output))

    # Correctness check against a bf16-consistent pure-JAX reference.
    refs = _reference(base_features, w_stack, b_stack)
    assert output_gaze.shape == (N, 2)
    assert jnp.allclose(output_gaze, refs[0], atol=2e-3, rtol=2e-3)
    for i, d in enumerate(DEGREE_LIST):
        got = angular_output[f"out_{d}_gaze"]
        assert got.shape == (N, 2)
        assert jnp.allclose(got, refs[1 + i], atol=2e-3, rtol=2e-3)

    print("KERNEL_OK")
</pallas_src>

<mosaic_0001>
module attributes {stable_mosaic.version = 11 : i64} {
  func.func @matrot_heads_kernel(%arg0: i32, %arg1: i32, %arg2: memref<2x4096xbf16, #tpu.memory_space<vmem>>, %arg3: memref<4096x4xbf16, #tpu.memory_space<vmem>>, %arg4: memref<1x4xf32, #tpu.memory_space<vmem>>, %arg5: memref<2x4xf32, #tpu.memory_space<vmem>>, %arg6: memref<2x4xf32, #tpu.memory_space<vmem>>) attributes {dimension_semantics = [#tpu.dimension_semantics<parallel>, #tpu.dimension_semantics<arbitrary>], iteration_bounds = array<i64: 1, 2>, scalar_prefetch = 0 : i64, scratch_operands = 1 : i64, tpu.core_type = #tpu.core_type<tc>, window_params = [{transform_indices = @transform_0, window_bounds = array<i64: 2, 4096>}, {transform_indices = @transform_1, window_bounds = array<i64: 4096, 4>}, {pipeline_mode = #tpu.pipeline_mode<synchronous>, transform_indices = @transform_2, window_bounds = array<i64: 1, 4>}, {transform_indices = @transform_3, window_bounds = array<i64: 2, 4>}]} {
    %c0_i32 = arith.constant 0 : i32
    %0 = arith.cmpi eq, %arg1, %c0_i32 : i32
    %1 = arith.extui %0 : i1 to i32
    %c0_i32_0 = arith.constant 0 : i32
    %2 = arith.cmpi ne, %1, %c0_i32_0 : i32
    scf.if %2 {
      %cst_15 = arith.constant 0.000000e+00 : f32
      %16 = vector.broadcast %cst_15 : f32 to vector<2x4xf32>
      %c0_16 = arith.constant 0 : index
      %c0_17 = arith.constant 0 : index
      %17 = vector.load %arg6[%c0_16, %c0_17] : memref<2x4xf32, #tpu.memory_space<vmem>>, vector<2x4xf32>
      tpu.vector_store %arg6[%c0_16, %c0_17], %16 {strides = array<i32>} : memref<2x4xf32, #tpu.memory_space<vmem>>, vector<2x4xf32>,
    } else {
    }
    %c0 = arith.constant 0 : index
    %c0_1 = arith.constant 0 : index
    %3 = vector.load %arg6[%c0, %c0_1] : memref<2x4xf32, #tpu.memory_space<vmem>>, vector<2x4xf32>
    %c0_2 = arith.constant 0 : index
    %c0_3 = arith.constant 0 : index
    %4 = vector.load %arg2[%c0_2, %c0_3] : memref<2x4096xbf16, #tpu.memory_space<vmem>>, vector<2x4096xbf16>
    %c0_4 = arith.constant 0 : index
    %c0_5 = arith.constant 0 : index
    %5 = vector.load %arg3[%c0_4, %c0_5] : memref<4096x4xbf16, #tpu.memory_space<vmem>>, vector<4096x4xbf16>
    %cst = arith.constant dense<0.000000e+00> : vector<2x4xf32>
    %6 = tpu.matmul %4, %5, %cst {dimension_numbers = #tpu.dot_dimension_numbers<[1], [0], [0], [1], [0, 0, 1, 1], [], []>} : vector<2x4096xbf16>, vector<4096x4xbf16>, vector<2x4xf32> -> vector<2x4xf32>
    %7 = arith.addf %3, %6 : vector<2x4xf32>
    %c0_6 = arith.constant 0 : index
    %c0_7 = arith.constant 0 : index
    %8 = vector.load %arg6[%c0_6, %c0_7] : memref<2x4xf32, #tpu.memory_space<vmem>>, vector<2x4xf32>
    tpu.vector_store %arg6[%c0_6, %c0_7], %7 {strides = array<i32>} : memref<2x4xf32, #tpu.memory_space<vmem>>, vector<2x4xf32>,
    %c0_8 = arith.constant 0 : index
    %c0_9 = arith.constant 0 : index
    %9 = vector.load %arg6[%c0_8, %c0_9] : memref<2x4xf32, #tpu.memory_space<vmem>>, vector<2x4xf32>
    %cst_10 = arith.constant 6.250000e-02 : f32
    %10 = vector.broadcast %cst_10 : f32 to vector<2x4xf32>
    %11 = arith.mulf %9, %10 : vector<2x4xf32>
    %c0_11 = arith.constant 0 : index
    %c0_12 = arith.constant 0 : index
    %12 = vector.load %arg4[%c0_11, %c0_12] : memref<1x4xf32, #tpu.memory_space<vmem>>, vector<1x4xf32>
    %13 = vector.broadcast %12 : vector<1x4xf32> to vector<2x4xf32>
    %14 = arith.addf %11, %13 : vector<2x4xf32>
    %c0_13 = arith.constant 0 : index
    %c0_14 = arith.constant 0 : index
    %15 = vector.load %arg5[%c0_13, %c0_14] : memref<2x4xf32, #tpu.memory_space<vmem>>, vector<2x4xf32>
    tpu.vector_store %arg5[%c0_13, %c0_14], %14 {strides = array<i32>} : memref<2x4xf32, #tpu.memory_space<vmem>>, vector<2x4xf32>,
    return
  }
  func.func @transform_0(%arg0: i32, %arg1: i32) -> (i32, i32) {
    %c0_i32 = arith.constant 0 : i32
    return %arg0, %arg1 : i32, i32
  }
  func.func @transform_1(%arg0: i32, %arg1: i32) -> (i32, i32) {
    %c0_i32 = arith.constant 0 : i32
    %c0_i32_0 = arith.constant 0 : i32
    return %arg1, %c0_i32 : i32, i32
  }
  func.func @transform_2(%arg0: i32, %arg1: i32) -> (i32, i32) {
    %c0_i32 = arith.constant 0 : i32
    %c0_i32_0 = arith.constant 0 : i32
    %c0_i32_1 = arith.constant 0 : i32
    return %c0_i32, %c0_i32_0 : i32, i32
  }
  func.func @transform_3(%arg0: i32, %arg1: i32) -> (i32, i32) {
    %c0_i32 = arith.constant 0 : i32
    %c0_i32_0 = arith.constant 0 : i32
    return %arg0, %c0_i32 : i32, i32
  }
}

</mosaic_0001>

<llo_original>
// kernel: matrot_ge_heads.1
$region0: #{matrot_ge_heads.1}
  #allocation0 [shape = 'u32[]', space=smem, size = 0x4, offset = 0x4, fixed_abs, tag = 'smem constant byte address 0x4 - core index']
  #allocation1 [shape = 'u32[72,128]{1,0:T(1,128)}', space=vmem, size = 0x9000, scoped, tag = 'internal scratch']
  #allocation2 [shape = 'f32[2,4]{1,0:T(2,128)}', space=vmem, size = 0x400, scoped, tag = 'scratch operand']
  %s0 = inlined_call_operand.vmem [shape: bf16[2,8192], index: 0, kind: input, shape index: {}]
  %s1 = inlined_call_operand.vmem [shape: bf16[8192,4], index: 1, kind: input, shape index: {}]
  %s2 = inlined_call_operand.vmem [shape: f32[1,4], index: 2, kind: input, shape index: {}]
  %s3 = inlined_call_operand.vmem [shape: f32[2,4], index: 3, kind: output, shape index: {}]
  %s4 = sld [smem:[#allocation0]]
  $region49: #{matrot_ge_heads.1} parent=0
    _
  %s6 = ssub.s32 1, %s4
  %s7 = scalar_select 0, %s6, %s4
  loop: start=0, step=1, limit=4
  $region2: #{matrot_ge_heads.1} parent=0 // loop_pre_header
    _
  $region3: #{matrot_ge_heads.1} parent=0 // loop_header
    %s9 = sphi 0, %s13
    %p10 = scmp.ge.s32.totalorder %s9, 4
    %s16 = sphi 0, %s28
    %s17 = sphi 0, %s24
    %s18 = sphi 0, %s16
    %s19 = sphi 0, %s17
    %s20 = sphi 0, %s18
    %s21 = sphi 0, %s19
    %s33 = sphi 0, %s35
    %s36 = sphi 0, %s33
    %s37 = sphi 0, %s36
    %s53 = sphi 0, %s37
    %s59 = sphi 0, %s61
    %s62 = sphi 0, %s59
    %s63 = sphi 0, %s62
    %s79 = sphi 0, %s63
    %s83 = sphi 0, %s83
    %s85 = sphi 0, %s83
    %s86 = sphi 0, %s85
    %s100 = sphi 0, %s86
    %s106 = sphi 0, %s108
    %s109 = sphi 0, %s106
    %s110 = sphi 0, %s109
    %s126 = sphi 0, %s110
  $region4: #{matrot_ge_heads.1} parent=0 // loop_header_branch
    %12 = sbr.rel (%p10) target = $region8
  $region5: #{matrot_ge_heads.1} parent=0 // loop_body
    %s14 = ssub.s32 %s9, 1
    %s15 = ssub.s32 %s9, 2
    %s22 = sadd.s32 1, %s17
    %p23 = scmp.ge.s32.totalorder %s22, 2
    %s24 = scalar_select %p23, 0, %s22
    %s25 = sadd.s32 1, %s16
    %s26 = scalar_select %p23, %s25, %s16
    %p27 = scmp.ge.s32.totalorder %s26, 1
    %s28 = scalar_select %p27, 0, %s26
    %s29 = ssub.s32 %s16, %s28
    %s30 = ssub.s32 %s17, %s24
    %s31 = sor.u32 %s29, %s30
    %p32 = scmp.eq.s32.totalorder %s31, 0
    %s34 = sadd.s32 %s33, 1
    %s35 = scalar_select %p32, %s33, %s34
    %p38 = pneg %p32
    %p39 = scmp.eq.s32.totalorder %s9, 1
    %p40 = por %p38, %p39
    %p41 = scmp.ne.s32.totalorder %s33, %s36
    %p42 = scmp.eq.s32.totalorder %s9, 0
    %p43 = por %p41, %p42
    %p44 = scmp.ne.s32.totalorder %s33, %s36
    %p45 = scmp.eq.s32.totalorder %s14, 1
    %p46 = por %p44, %p45
    %p47 = scmp.ne.s32.totalorder %s36, %s37
    %p48 = scmp.eq.s32.totalorder %s14, 0
    %p49 = por %p47, %p48
    %p50 = scmp.ne.s32.totalorder %s36, %s37
    %p51 = scmp.eq.s32.totalorder %s15, 1
    %p52 = por %p50, %p51
    %p54 = scmp.ne.s32.totalorder %s37, %s53
    %p55 = scmp.eq.s32.totalorder %s15, 0
    %p56 = por %p54, %p55
    %s57 = ssub.s32 %s17, %s24
    %p58 = scmp.eq.s32.totalorder %s57, 0
    %s60 = sadd.s32 %s59, 1
    %s61 = scalar_select %p58, %s59, %s60
    %p64 = pneg %p58
    %p65 = scmp.eq.s32.totalorder %s9, 1
    %p66 = por %p64, %p65
    %p67 = scmp.ne.s32.totalorder %s59, %s62
    %p68 = scmp.eq.s32.totalorder %s9, 0
    %p69 = por %p67, %p68
    %p70 = scmp.ne.s32.totalorder %s59, %s62
    %p71 = scmp.eq.s32.totalorder %s14, 1
    %p72 = por %p70, %p71
    %p73 = scmp.ne.s32.totalorder %s62, %s63
    %p74 = scmp.eq.s32.totalorder %s14, 0
    %p75 = por %p73, %p74
    %p76 = scmp.ne.s32.totalorder %s62, %s63
    %p77 = scmp.eq.s32.totalorder %s15, 1
    %p78 = por %p76, %p77
    %p80 = scmp.ne.s32.totalorder %s63, %s79
    %p81 = scmp.eq.s32.totalorder %s15, 0
    %p82 = por %p80, %p81
    %s84 = sadd.s32 %s83, 1
    %p87 = scmp.eq.s32.totalorder %s9, 1
    %p88 = scmp.ne.s32.totalorder %s83, %s85
    %p89 = scmp.eq.s32.totalorder %s9, 0
    %p90 = por %p88, %p89
    %p91 = scmp.ne.s32.totalorder %s83, %s85
    %p92 = scmp.eq.s32.totalorder %s14, 1
    %p93 = por %p91, %p92
    %p94 = scmp.ne.s32.totalorder %s85, %s86
    %p95 = scmp.eq.s32.totalorder %s14, 0
    %p96 = por %p94, %p95
    %p97 = scmp.ne.s32.totalorder %s85, %s86
    %p98 = scmp.eq.s32.totalorder %s15, 1
    %p99 = por %p97, %p98
    %p101 = scmp.ne.s32.totalorder %s86, %s100
    %p102 = scmp.eq.s32.totalorder %s15, 0
    %p103 = por %p101, %p102
    %s104 = ssub.s32 %s16, %s28
    %p105 = scmp.eq.s32.totalorder %s104, 0
    %s107 = sadd.s32 %s106, 1
    %s108 = scalar_select %p105, %s106, %s107
    %p111 = pneg %p105
    %p112 = scmp.eq.s32.totalorder %s9, 1
    %p113 = por %p111, %p112
    %p114 = scmp.ne.s32.totalorder %s106, %s109
    %p115 = scmp.eq.s32.totalorder %s9, 0
    %p116 = por %p114, %p115
    %p117 = scmp.ne.s32.totalorder %s106, %s109
    %p118 = scmp.eq.s32.totalorder %s14, 1
    %p119 = por %p117, %p118
    %p120 = scmp.ne.s32.totalorder %s109, %s110
    %p121 = scmp.eq.s32.totalorder %s14, 0
    %p122 = por %p120, %p121
    %p123 = scmp.ne.s32.totalorder %s109, %s110
    %p124 = scmp.eq.s32.totalorder %s15, 1
    %p125 = por %p123, %p124
    %p127 = scmp.ne.s32.totalorder %s110, %s126
    %p128 = scmp.eq.s32.totalorder %s15, 0
    %p129 = por %p127, %p128
    %p130 = scmp.le.s32.totalorder 1, %s9
    %p131 = scmp.lt.s32.totalorder %s9, 3
    %p132 = pnand %p130, %p131
    %p133 = pneg %p132
    // Predicated region
    $region9: #{matrot_ge_heads.1} parent=5 // pred_check
      _
    $region10: #{matrot_ge_heads.1} parent=5 // pred_check_branch
      %135 = sbr.rel (%p132) target = $region12
    $region11: #{matrot_ge_heads.1} parent=5 // pred_region
      %s136 = ssub.s32 %s9, 1
      // Predicated region
      $region13: #{matrot_ge_heads.1} parent=11 // pred_check
        %p137 = pneg %p96
      $region14: #{matrot_ge_heads.1} parent=11 // pred_check_branch
        %139 = sbr.rel (%p137) target = $region16
      $region15: #{matrot_ge_heads.1} parent=11 // pred_region
        _
      $region16: #{matrot_ge_heads.1} parent=11 // pred_fallthru
        _
    $region12: #{matrot_ge_heads.1} parent=5 // pred_fallthru
      _
    %p140 = scmp.lt.s32.totalorder %s9, 2
    // Predicated region
    $region17: #{matrot_ge_heads.1} parent=5 // pred_check
      %p141 = pneg %p140
    $region18: #{matrot_ge_heads.1} parent=5 // pred_check_branch
      %143 = sbr.rel (%p141) target = $region20
    $region19: #{matrot_ge_heads.1} parent=5 // pred_region
      // Predicated region
      $region21: #{matrot_ge_heads.1} parent=19 // pred_check
        %p144 = pneg %p43
      $region22: #{matrot_ge_heads.1} parent=19 // pred_check_branch
        %146 = sbr.rel (%p144) target = $region24
      $region23: #{matrot_ge_heads.1} parent=19 // pred_region
        %s147 = smul.u32 32, %s17
        %p148 = scmp.lt.s32.totalorder %s16, 0
        %s149 = scalar_select %p148, %s16, 0
        %p150 = scmp.lt.s32.totalorder %s147, 63
        %s151 = scalar_select %p150, %s147, 63
        %s152 = smul.addr %s149, 64
        %s153 = sadd.s32 %s151, %s152
        %s154 = scalar_lea.vmem %s0, %s153
        %s155 = smul.u32 32, %s17
      $region24: #{matrot_ge_heads.1} parent=19 // pred_fallthru
        _
      // Predicated region
      $region25: #{matrot_ge_heads.1} parent=19 // pred_check
        %p156 = pneg %p69
      $region26: #{matrot_ge_heads.1} parent=19 // pred_check_branch
        %158 = sbr.rel (%p156) target = $region28
      $region27: #{matrot_ge_heads.1} parent=19 // pred_region
        %s159 = smul.u32 512, %s17
        %p160 = scmp.lt.s32.totalorder %s159, 1023
        %s161 = scalar_select %p160, %s159, 1023
        %s162 = smul.addr %s161, 4
        %s163 = scalar_lea.vmem %s1, %s162
        %s164 = smul.u32 512, %s17
      $region28: #{matrot_ge_heads.1} parent=19 // pred_fallthru
        _
    $region20: #{matrot_ge_heads.1} parent=5 // pred_fallthru
      _
    %p165 = scmp.le.s32.totalorder 1, %s9
    %p166 = scmp.lt.s32.totalorder %s9, 3
    %p167 = pnand %p165, %p166
    %p168 = pneg %p167
    // Predicated region
    $region29: #{matrot_ge_heads.1} parent=5 // pred_check
      _
    $region30: #{matrot_ge_heads.1} parent=5 // pred_check_branch
      %170 = sbr.rel (%p167) target = $region32
    $region31: #{matrot_ge_heads.1} parent=5 // pred_region
      %s171 = ssub.s32 %s9, 1
      %s172 = smul.u32 32, %s19
      %p173 = scmp.lt.s32.totalorder %s18, 0
      %s174 = scalar_select %p173, %s18, 0
      %p175 = scmp.lt.s32.totalorder %s172, 63
      %s176 = scalar_select %p175, %s172, 63
      %s177 = smul.addr %s174, 64
      %s178 = sadd.s32 %s176, %s177
      %s179 = scalar_lea.vmem %s0, %s178
      %p180 = pneg %p49
      %p181 = pneg %p46
      %s182 = smul.u32 512, %s19
      %p183 = scmp.lt.s32.totalorder %s182, 1023
      %s184 = scalar_select %p183, %s182, 1023
      %s185 = smul.addr %s184, 4
      %s186 = scalar_lea.vmem %s1, %s185
      %p187 = pneg %p75
      %p188 = pneg %p72
      %p189 = pneg %p96
      %p190 = pneg %p93
      %p191 = pneg %p122
      %p192 = pneg %p119
      %p193 = scmp.lt.s32.totalorder %s18, 0
      %s194 = scalar_select %p193, %s18, 0
      %s195 = smul.addr %s194, 2
      %s196 = scalar_lea.vmem %s3, %s195
      %s197 = smul.u32 32, %s19
      %p198 = scmp.lt.s32.totalorder %s18, 0
      %s199 = scalar_select %p198, %s18, 0
      %p200 = scmp.lt.s32.totalorder %s197, 63
      %s201 = scalar_select %p200, %s197, 63
      %s202 = smul.addr %s199, 64
      %s203 = sadd.s32 %s201, %s202
      %s204 = scalar_lea.vmem %s0, %s203
      %s205 = smul.u32 32, %s19
      %s206 = smul.u32 512, %s19
      %p207 = scmp.lt.s32.totalorder %s206, 1023
      %s208 = scalar_select %p207, %s206, 1023
      %s209 = smul.addr %s208, 4
      %s210 = scalar_lea.vmem %s1, %s209
      %s211 = smul.u32 512, %s19
      %p212 = scmp.lt.s32.totalorder %s18, 0
      %s213 = scalar_select %p212, %s18, 0
      %s214 = smul.addr %s213, 2
      %s215 = scalar_lea.vmem %s3, %s214
      %p216 = scmp.eq.s32.totalorder %s19, 0
      // Predicated region
      $region33: #{matrot_ge_heads.1} parent=31 // pred_check
        %p217 = pneg %p216
      $region34: #{matrot_ge_heads.1} parent=31 // pred_check_branch
        %219 = sbr.rel (%p217) target = $region36
      $region35: #{matrot_ge_heads.1} parent=31 // pred_region
        %vm220 = vcmask 25600
        %221 = vst.msk [vmem:[#allocation2] sm:$0x3] %vm220, 0.0
      $region36: #{matrot_ge_heads.1} parent=31 // pred_fallthru
        _
      %v222 = vld [vmem:[#allocation2] sm:$0x3]
      %v223 = vld [vmem:[%s204] sm:$0xff]
      %v224 = vld [vmem:[%s204 + $0x8] sm:$0xff]
      %v225 = vld [vmem:[%s204 + $0x10] sm:$0xff]
      %v226 = vld [vmem:[%s204 + $0x18] sm:$0xff]
      %v227 = vld [vmem:[%s210] sm:$0xf]
      %v228 = vld [vmem:[%s210 + $0x4] sm:$0xf]
      %v229 = vld [vmem:[%s210 + $0x8] sm:$0xf]
      %v230 = vld [vmem:[%s210 + $0xc] sm:$0xf]
      %v231 = vld [vmem:[%s210 + $0x10] sm:$0xf]
      %v232 = vld [vmem:[%s210 + $0x14] sm:$0xf]
      %v233 = vld [vmem:[%s210 + $0x18] sm:$0xf]
      %v234 = vld [vmem:[%s210 + $0x1c] sm:$0xf]
      %v235 = vld [vmem:[%s210 + $0x20] sm:$0xf]
      %v236 = vld [vmem:[%s210 + $0x24] sm:$0xf]
      %v237 = vld [vmem:[%s210 + $0x28] sm:$0xf]
      %v238 = vld [vmem:[%s210 + $0x2c] sm:$0xf]
      %v239 = vld [vmem:[%s210 + $0x30] sm:$0xf]
      %v240 = vld [vmem:[%s210 + $0x34] sm:$0xf]
      %v241 = vld [vmem:[%s210 + $0x38] sm:$0xf]
      %v242 = vld [vmem:[%s210 + $0x3c] sm:$0xf]
      %v243 = vld [vmem:[%s210 + $0x40] sm:$0xf]
      %v244 = vld [vmem:[%s210 + $0x44] sm:$0xf]
      %v245 = vld [vmem:[%s210 + $0x48] sm:$0xf]
      %v246 = vld [vmem:[%s210 + $0x4c] sm:$0xf]
      %v247 = vld [vmem:[%s210 + $0x50] sm:$0xf]
      %v248 = vld [vmem:[%s210 + $0x54] sm:$0xf]
      %v249 = vld [vmem:[%s210 + $0x58] sm:$0xf]
      %v250 = vld [vmem:[%s210 + $0x5c] sm:$0xf]
      %v251 = vld [vmem:[%s210 + $0x60] sm:$0xf]
      %v252 = vld [vmem:[%s210 + $0x64] sm:$0xf]
      %v253 = vld [vmem:[%s210 + $0x68] sm:$0xf]
      %v254 = vld [vmem:[%s210 + $0x6c] sm:$0xf]
      %v255 = vld [vmem:[%s210 + $0x70] sm:$0xf]
      %v256 = vld [vmem:[%s210 + $0x74] sm:$0xf]
      %v257 = vld [vmem:[%s210 + $0x78] sm:$0xf]
      %v258 = vld [vmem:[%s210 + $0x7c] sm:$0xf]
      %v259 = vld [vmem:[%s210 + $0x80] sm:$0xf]
      %v260 = vld [vmem:[%s210 + $0x84] sm:$0xf]
      %v261 = vld [vmem:[%s210 + $0x88] sm:$0xf]
      %v262 = vld [vmem:[%s210 + $0x8c] sm:$0xf]
      %v263 = vld [vmem:[%s210 + $0x90] sm:$0xf]
      %v264 = vld [vmem:[%s210 + $0x94] sm:$0xf]
      %v265 = vld [vmem:[%s210 + $0x98] sm:$0xf]
      %v266 = vld [vmem:[%s210 + $0x9c] sm:$0xf]
      %v267 = vld [vmem:[%s210 + $0xa0] sm:$0xf]
      %v268 = vld [vmem:[%s210 + $0xa4] sm:$0xf]
      %v269 = vld [vmem:[%s210 + $0xa8] sm:$0xf]
      %v270 = vld [vmem:[%s210 + $0xac] sm:$0xf]
      %v271 = vld [vmem:[%s210 + $0xb0] sm:$0xf]
      %v272 = vld [vmem:[%s210 + $0xb4] sm:$0xf]
      %v273 = vld [vmem:[%s210 + $0xb8] sm:$0xf]
      %v274 = vld [vmem:[%s210 + $0xbc] sm:$0xf]
      %v275 = vld [vmem:[%s210 + $0xc0] sm:$0xf]
      %v276 = vld [vmem:[%s210 + $0xc4] sm:$0xf]
      %v277 = vld [vmem:[%s210 + $0xc8] sm:$0xf]
      %v278 = vld [vmem:[%s210 + $0xcc] sm:$0xf]
      %v279 = vld [vmem:[%s210 + $0xd0] sm:$0xf]
      %v280 = vld [vmem:[%s210 + $0xd4] sm:$0xf]
      %v281 = vld [vmem:[%s210 + $0xd8] sm:$0xf]
      %v282 = vld [vmem:[%s210 + $0xdc] sm:$0xf]
      %v283 = vld [vmem:[%s210 + $0xe0] sm:$0xf]
      %v284 = vld [vmem:[%s210 + $0xe4] sm:$0xf]
      %v285 = vld [vmem:[%s210 + $0xe8] sm:$0xf]
      %v286 = vld [vmem:[%s210 + $0xec] sm:$0xf]
      %v287 = vld [vmem:[%s210 + $0xf0] sm:$0xf]
      %v288 = vld [vmem:[%s210 + $0xf4] sm:$0xf]
      %v289 = vld [vmem:[%s210 + $0xf8] sm:$0xf]
      %v290 = vld [vmem:[%s210 + $0xfc] sm:$0xf]
      %v291 = vld [vmem:[%s210 + $0x100] sm:$0xf]
      %v292 = vld [vmem:[%s210 + $0x104] sm:$0xf]
      %v293 = vld [vmem:[%s210 + $0x108] sm:$0xf]
      %v294 = vld [vmem:[%s210 + $0x10c] sm:$0xf]
      %v295 = vld [vmem:[%s210 + $0x110] sm:$0xf]
      %v296 = vld [vmem:[%s210 + $0x114] sm:$0xf]
      %v297 = vld [vmem:[%s210 + $0x118] sm:$0xf]
      %v298 = vld [vmem:[%s210 + $0x11c] sm:$0xf]
      %v299 = vld [vmem:[%s210 + $0x120] sm:$0xf]
      %v300 = vld [vmem:[%s210 + $0x124] sm:$0xf]
      %v301 = vld [vmem:[%s210 + $0x128] sm:$0xf]
      %v302 = vld [vmem:[%s210 + $0x12c] sm:$0xf]
      %v303 = vld [vmem:[%s210 + $0x130] sm:$0xf]
      %v304 = vld [vmem:[%s210 + $0x134] sm:$0xf]
      %v305 = vld [vmem:[%s210 + $0x138] sm:$0xf]
      %v306 = vld [vmem:[%s210 + $0x13c] sm:$0xf]
      %v307 = vld [vmem:[%s210 + $0x140] sm:$0xf]
      %v308 = vld [vmem:[%s210 + $0x144] sm:$0xf]
      %v309 = vld [vmem:[%s210 + $0x148] sm:$0xf]
      %v310 = vld [vmem:[%s210 + $0x14c] sm:$0xf]
      %v311 = vld [vmem:[%s210 + $0x150] sm:$0xf]
      %v312 = vld [vmem:[%s210 + $0x154] sm:$0xf]
      %v313 = vld [vmem:[%s210 + $0x158] sm:$0xf]
      %v314 = vld [vmem:[%s210 + $0x15c] sm:$0xf]
      %v315 = vld [vmem:[%s210 + $0x160] sm:$0xf]
      %v316 = vld [vmem:[%s210 + $0x164] sm:$0xf]
      %v317 = vld [vmem:[%s210 + $0x168] sm:$0xf]
      %v318 = vld [vmem:[%s210 + $0x16c] sm:$0xf]
      %v319 = vld [vmem:[%s210 + $0x170] sm:$0xf]
      %v320 = vld [vmem:[%s210 + $0x174] sm:$0xf]
      %v321 = vld [vmem:[%s210 + $0x178] sm:$0xf]
      %v322 = vld [vmem:[%s210 + $0x17c] sm:$0xf]
      %v323 = vld [vmem:[%s210 + $0x180] sm:$0xf]
      %v324 = vld [vmem:[%s210 + $0x184] sm:$0xf]
      %v325 = vld [vmem:[%s210 + $0x188] sm:$0xf]
      %v326 = vld [vmem:[%s210 + $0x18c] sm:$0xf]
      %v327 = vld [vmem:[%s210 + $0x190] sm:$0xf]
      %v328 = vld [vmem:[%s210 + $0x194] sm:$0xf]
      %v329 = vld [vmem:[%s210 + $0x198] sm:$0xf]
      %v330 = vld [vmem:[%s210 + $0x19c] sm:$0xf]
      %v331 = vld [vmem:[%s210 + $0x1a0] sm:$0xf]
      %v332 = vld [vmem:[%s210 + $0x1a4] sm:$0xf]
      %v333 = vld [vmem:[%s210 + $0x1a8] sm:$0xf]
      %v334 = vld [vmem:[%s210 + $0x1ac] sm:$0xf]
      %v335 = vld [vmem:[%s210 + $0x1b0] sm:$0xf]
      %v336 = vld [vmem:[%s210 + $0x1b4] sm:$0xf]
      %v337 = vld [vmem:[%s210 + $0x1b8] sm:$0xf]
      %v338 = vld [vmem:[%s210 + $0x1bc] sm:$0xf]
      %v339 = vld [vmem:[%s210 + $0x1c0] sm:$0xf]
      %v340 = vld [vmem:[%s210 + $0x1c4] sm:$0xf]
      %v341 = vld [vmem:[%s210 + $0x1c8] sm:$0xf]
      %v342 = vld [vmem:[%s210 + $0x1cc] sm:$0xf]
      %v343 = vld [vmem:[%s210 + $0x1d0] sm:$0xf]
      %v344 = vld [vmem:[%s210 + $0x1d4] sm:$0xf]
      %v345 = vld [vmem:[%s210 + $0x1d8] sm:$0xf]
      %v346 = vld [vmem:[%s210 + $0x1dc] sm:$0xf]
      %v347 = vld [vmem:[%s210 + $0x1e0] sm:$0xf]
      %v348 = vld [vmem:[%s210 + $0x1e4] sm:$0xf]
      %v349 = vld [vmem:[%s210 + $0x1e8] sm:$0xf]
      %v350 = vld [vmem:[%s210 + $0x1ec] sm:$0xf]
      %v351 = vld [vmem:[%s210 + $0x1f0] sm:$0xf]
      %v352 = vld [vmem:[%s210 + $0x1f4] sm:$0xf]
      %v353 = vld [vmem:[%s210 + $0x1f8] sm:$0xf]
      %v354 = vld [vmem:[%s210 + $0x1fc] sm:$0xf]
      %v355 = vld [vmem:[%s210 + $0x200] sm:$0xf]
      %v356 = vld [vmem:[%s210 + $0x204] sm:$0xf]
      %v357 = vld [vmem:[%s210 + $0x208] sm:$0xf]
      %v358 = vld [vmem:[%s210 + $0x20c] sm:$0xf]
      %v359 = vld [vmem:[%s210 + $0x210] sm:$0xf]
      %v360 = vld [vmem:[%s210 + $0x214] sm:$0xf]
      %v361 = vld [vmem:[%s210 + $0x218] sm:$0xf]
      %v362 = vld [vmem:[%s210 + $0x21c] sm:$0xf]
      %v363 = vld [vmem:[%s210 + $0x220] sm:$0xf]
      %v364 = vld [vmem:[%s210 + $0x224] sm:$0xf]
      %v365 = vld [vmem:[%s210 + $0x228] sm:$0xf]
      %v366 = vld [vmem:[%s210 + $0x22c] sm:$0xf]
      %v367 = vld [vmem:[%s210 + $0x230] sm:$0xf]
      %v368 = vld [vmem:[%s210 + $0x234] sm:$0xf]
      %v369 = vld [vmem:[%s210 + $0x238] sm:$0xf]
      %v370 = vld [vmem:[%s210 + $0x23c] sm:$0xf]
      %v371 = vld [vmem:[%s210 + $0x240] sm:$0xf]
      %v372 = vld [vmem:[%s210 + $0x244] sm:$0xf]
      %v373 = vld [vmem:[%s210 + $0x248] sm:$0xf]
      %v374 = vld [vmem:[%s210 + $0x24c] sm:$0xf]
      %v375 = vld [vmem:[%s210 + $0x250] sm:$0xf]
      %v376 = vld [vmem:[%s210 + $0x254] sm:$0xf]
      %v377 = vld [vmem:[%s210 + $0x258] sm:$0xf]
      %v378 = vld [vmem:[%s210 + $0x25c] sm:$0xf]
      %v379 = vld [vmem:[%s210 + $0x260] sm:$0xf]
      %v380 = vld [vmem:[%s210 + $0x264] sm:$0xf]
      %v381 = vld [vmem:[%s210 + $0x268] sm:$0xf]
      %v382 = vld [vmem:[%s210 + $0x26c] sm:$0xf]
      %v383 = vld [vmem:[%s210 + $0x270] sm:$0xf]
      %v384 = vld [vmem:[%s210 + $0x274] sm:$0xf]
      %v385 = vld [vmem:[%s210 + $0x278] sm:$0xf]
      %v386 = vld [vmem:[%s210 + $0x27c] sm:$0xf]
      %v387 = vld [vmem:[%s210 + $0x280] sm:$0xf]
      %v388 = vld [vmem:[%s210 + $0x284] sm:$0xf]
      %v389 = vld [vmem:[%s210 + $0x288] sm:$0xf]
      %v390 = vld [vmem:[%s210 + $0x28c] sm:$0xf]
      %v391 = vld [vmem:[%s210 + $0x290] sm:$0xf]
      %v392 = vld [vmem:[%s210 + $0x294] sm:$0xf]
      %v393 = vld [vmem:[%s210 + $0x298] sm:$0xf]
      %v394 = vld [vmem:[%s210 + $0x29c] sm:$0xf]
      %v395 = vld [vmem:[%s210 + $0x2a0] sm:$0xf]
      %v396 = vld [vmem:[%s210 + $0x2a4] sm:$0xf]
      %v397 = vld [vmem:[%s210 + $0x2a8] sm:$0xf]
      %v398 = vld [vmem:[%s210 + $0x2ac] sm:$0xf]
      %v399 = vld [vmem:[%s210 + $0x2b0] sm:$0xf]
      %v400 = vld [vmem:[%s210 + $0x2b4] sm:$0xf]
      %v401 = vld [vmem:[%s210 + $0x2b8] sm:$0xf]
      %v402 = vld [vmem:[%s210 + $0x2bc] sm:$0xf]
      %v403 = vld [vmem:[%s210 + $0x2c0] sm:$0xf]
      %v404 = vld [vmem:[%s210 + $0x2c4] sm:$0xf]
      %v405 = vld [vmem:[%s210 + $0x2c8] sm:$0xf]
      %v406 = vld [vmem:[%s210 + $0x2cc] sm:$0xf]
      %v407 = vld [vmem:[%s210 + $0x2d0] sm:$0xf]
      %v408 = vld [vmem:[%s210 + $0x2d4] sm:$0xf]
      %v409 = vld [vmem:[%s210 + $0x2d8] sm:$0xf]
      %v410 = vld [vmem:[%s210 + $0x2dc] sm:$0xf]
      %v411 = vld [vmem:[%s210 + $0x2e0] sm:$0xf]
      %v412 = vld [vmem:[%s210 + $0x2e4] sm:$0xf]
      %v413 = vld [vmem:[%s210 + $0x2e8] sm:$0xf]
      %v414 = vld [vmem:[%s210 + $0x2ec] sm:$0xf]
      %v415 = vld [vmem:[%s210 + $0x2f0] sm:$0xf]
      %v416 = vld [vmem:[%s210 + $0x2f4] sm:$0xf]
      %v417 = vld [vmem:[%s210 + $0x2f8] sm:$0xf]
      %v418 = vld [vmem:[%s210 + $0x2fc] sm:$0xf]
      %v419 = vld [vmem:[%s210 + $0x300] sm:$0xf]
      %v420 = vld [vmem:[%s210 + $0x304] sm:$0xf]
      %v421 = vld [vmem:[%s210 + $0x308] sm:$0xf]
      %v422 = vld [vmem:[%s210 + $0x30c] sm:$0xf]
      %v423 = vld [vmem:[%s210 + $0x310] sm:$0xf]
      %v424 = vld [vmem:[%s210 + $0x314] sm:$0xf]
      %v425 = vld [vmem:[%s210 + $0x318] sm:$0xf]
      %v426 = vld [vmem:[%s210 + $0x31c] sm:$0xf]
      %v427 = vld [vmem:[%s210 + $0x320] sm:$0xf]
      %v428 = vld [vmem:[%s210 + $0x324] sm:$0xf]
      %v429 = vld [vmem:[%s210 + $0x328] sm:$0xf]
      %v430 = vld [vmem:[%s210 + $0x32c] sm:$0xf]
      %v431 = vld [vmem:[%s210 + $0x330] sm:$0xf]
      %v432 = vld [vmem:[%s210 + $0x334] sm:$0xf]
      %v433 = vld [vmem:[%s210 + $0x338] sm:$0xf]
      %v434 = vld [vmem:[%s210 + $0x33c] sm:$0xf]
      %v435 = vld [vmem:[%s210 + $0x340] sm:$0xf]
      %v436 = vld [vmem:[%s210 + $0x344] sm:$0xf]
      %v437 = vld [vmem:[%s210 + $0x348] sm:$0xf]
      %v438 = vld [vmem:[%s210 + $0x34c] sm:$0xf]
      %v439 = vld [vmem:[%s210 + $0x350] sm:$0xf]
      %v440 = vld [vmem:[%s210 + $0x354] sm:$0xf]
      %v441 = vld [vmem:[%s210 + $0x358] sm:$0xf]
      %v442 = vld [vmem:[%s210 + $0x35c] sm:$0xf]
      %v443 = vld [vmem:[%s210 + $0x360] sm:$0xf]
      %v444 = vld [vmem:[%s210 + $0x364] sm:$0xf]
      %v445 = vld [vmem:[%s210 + $0x368] sm:$0xf]
      %v446 = vld [vmem:[%s210 + $0x36c] sm:$0xf]
      %v447 = vld [vmem:[%s210 + $0x370] sm:$0xf]
      %v448 = vld [vmem:[%s210 + $0x374] sm:$0xf]
      %v449 = vld [vmem:[%s210 + $0x378] sm:$0xf]
      %v450 = vld [vmem:[%s210 + $0x37c] sm:$0xf]
      %v451 = vld [vmem:[%s210 + $0x380] sm:$0xf]
      %v452 = vld [vmem:[%s210 + $0x384] sm:$0xf]
      %v453 = vld [vmem:[%s210 + $0x388] sm:$0xf]
      %v454 = vld [vmem:[%s210 + $0x38c] sm:$0xf]
      %v455 = vld [vmem:[%s210 + $0x390] sm:$0xf]
      %v456 = vld [vmem:[%s210 + $0x394] sm:$0xf]
      %v457 = vld [vmem:[%s210 + $0x398] sm:$0xf]
      %v458 = vld [vmem:[%s210 + $0x39c] sm:$0xf]
      %v459 = vld [vmem:[%s210 + $0x3a0] sm:$0xf]
      %v460 = vld [vmem:[%s210 + $0x3a4] sm:$0xf]
      %v461 = vld [vmem:[%s210 + $0x3a8] sm:$0xf]
      %v462 = vld [vmem:[%s210 + $0x3ac] sm:$0xf]
      %v463 = vld [vmem:[%s210 + $0x3b0] sm:$0xf]
      %v464 = vld [vmem:[%s210 + $0x3b4] sm:$0xf]
      %v465 = vld [vmem:[%s210 + $0x3b8] sm:$0xf]
      %v466 = vld [vmem:[%s210 + $0x3bc] sm:$0xf]
      %v467 = vld [vmem:[%s210 + $0x3c0] sm:$0xf]
      %v468 = vld [vmem:[%s210 + $0x3c4] sm:$0xf]
      %v469 = vld [vmem:[%s210 + $0x3c8] sm:$0xf]
      %v470 = vld [vmem:[%s210 + $0x3cc] sm:$0xf]
      %v471 = vld [vmem:[%s210 + $0x3d0] sm:$0xf]
      %v472 = vld [vmem:[%s210 + $0x3d4] sm:$0xf]
      %v473 = vld [vmem:[%s210 + $0x3d8] sm:$0xf]
      %v474 = vld [vmem:[%s210 + $0x3dc] sm:$0xf]
      %v475 = vld [vmem:[%s210 + $0x3e0] sm:$0xf]
      %v476 = vld [vmem:[%s210 + $0x3e4] sm:$0xf]
      %v477 = vld [vmem:[%s210 + $0x3e8] sm:$0xf]
      %v478 = vld [vmem:[%s210 + $0x3ec] sm:$0xf]
      %v479 = vld [vmem:[%s210 + $0x3f0] sm:$0xf]
      %v480 = vld [vmem:[%s210 + $0x3f4] sm:$0xf]
      %v481 = vld [vmem:[%s210 + $0x3f8] sm:$0xf]
      %v482 = vld [vmem:[%s210 + $0x3fc] sm:$0xf]
      %v483 = vld [vmem:[%s210 + $0x400] sm:$0xf]
      %v484 = vld [vmem:[%s210 + $0x404] sm:$0xf]
      %v485 = vld [vmem:[%s210 + $0x408] sm:$0xf]
      %v486 = vld [vmem:[%s210 + $0x40c] sm:$0xf]
      %v487 = vld [vmem:[%s210 + $0x410] sm:$0xf]
      %v488 = vld [vmem:[%s210 + $0x414] sm:$0xf]
      %v489 = vld [vmem:[%s210 + $0x418] sm:$0xf]
      %v490 = vld [vmem:[%s210 + $0x41c] sm:$0xf]
      %v491 = vld [vmem:[%s210 + $0x420] sm:$0xf]
      %v492 = vld [vmem:[%s210 + $0x424] sm:$0xf]
      %v493 = vld [vmem:[%s210 + $0x428] sm:$0xf]
      %v494 = vld [vmem:[%s210 + $0x42c] sm:$0xf]
      %v495 = vld [vmem:[%s210 + $0x430] sm:$0xf]
      %v496 = vld [vmem:[%s210 + $0x434] sm:$0xf]
      %v497 = vld [vmem:[%s210 + $0x438] sm:$0xf]
      %v498 = vld [vmem:[%s210 + $0x43c] sm:$0xf]
      %v499 = vld [vmem:[%s210 + $0x440] sm:$0xf]
      %v500 = vld [vmem:[%s210 + $0x444] sm:$0xf]
      %v501 = vld [vmem:[%s210 + $0x448] sm:$0xf]
      %v502 = vld [vmem:[%s210 + $0x44c] sm:$0xf]
      %v503 = vld [vmem:[%s210 + $0x450] sm:$0xf]
      %v504 = vld [vmem:[%s210 + $0x454] sm:$0xf]
      %v505 = vld [vmem:[%s210 + $0x458] sm:$0xf]
      %v506 = vld [vmem:[%s210 + $0x45c] sm:$0xf]
      %v507 = vld [vmem:[%s210 + $0x460] sm:$0xf]
      %v508 = vld [vmem:[%s210 + $0x464] sm:$0xf]
      %v509 = vld [vmem:[%s210 + $0x468] sm:$0xf]
      %v510 = vld [vmem:[%s210 + $0x46c] sm:$0xf]
      %v511 = vld [vmem:[%s210 + $0x470] sm:$0xf]
      %v512 = vld [vmem:[%s210 + $0x474] sm:$0xf]
      %v513 = vld [vmem:[%s210 + $0x478] sm:$0xf]
      %v514 = vld [vmem:[%s210 + $0x47c] sm:$0xf]
      %v515 = vld [vmem:[%s210 + $0x480] sm:$0xf]
      %v516 = vld [vmem:[%s210 + $0x484] sm:$0xf]
      %v517 = vld [vmem:[%s210 + $0x488] sm:$0xf]
      %v518 = vld [vmem:[%s210 + $0x48c] sm:$0xf]
      %v519 = vld [vmem:[%s210 + $0x490] sm:$0xf]
      %v520 = vld [vmem:[%s210 + $0x494] sm:$0xf]
      %v521 = vld [vmem:[%s210 + $0x498] sm:$0xf]
      %v522 = vld [vmem:[%s210 + $0x49c] sm:$0xf]
      %v523 = vld [vmem:[%s210 + $0x4a0] sm:$0xf]
      %v524 = vld [vmem:[%s210 + $0x4a4] sm:$0xf]
      %v525 = vld [vmem:[%s210 + $0x4a8] sm:$0xf]
      %v526 = vld [vmem:[%s210 + $0x4ac] sm:$0xf]
      %v527 = vld [vmem:[%s210 + $0x4b0] sm:$0xf]
      %v528 = vld [vmem:[%s210 + $0x4b4] sm:$0xf]
      %v529 = vld [vmem:[%s210 + $0x4b8] sm:$0xf]
      %v530 = vld [vmem:[%s210 + $0x4bc] sm:$0xf]
      %v531 = vld [vmem:[%s210 + $0x4c0] sm:$0xf]
      %v532 = vld [vmem:[%s210 + $0x4c4] sm:$0xf]
      %v533 = vld [vmem:[%s210 + $0x4c8] sm:$0xf]
      %v534 = vld [vmem:[%s210 + $0x4cc] sm:$0xf]
      %v535 = vld [vmem:[%s210 + $0x4d0] sm:$0xf]
      %v536 = vld [vmem:[%s210 + $0x4d4] sm:$0xf]
      %v537 = vld [vmem:[%s210 + $0x4d8] sm:$0xf]
      %v538 = vld [vmem:[%s210 + $0x4dc] sm:$0xf]
      %v539 = vld [vmem:[%s210 + $0x4e0] sm:$0xf]
      %v540 = vld [vmem:[%s210 + $0x4e4] sm:$0xf]
      %v541 = vld [vmem:[%s210 + $0x4e8] sm:$0xf]
      %v542 = vld [vmem:[%s210 + $0x4ec] sm:$0xf]
      %v543 = vld [vmem:[%s210 + $0x4f0] sm:$0xf]
      %v544 = vld [vmem:[%s210 + $0x4f4] sm:$0xf]
      %v545 = vld [vmem:[%s210 + $0x4f8] sm:$0xf]
      %v546 = vld [vmem:[%s210 + $0x4fc] sm:$0xf]
      %v547 = vld [vmem:[%s210 + $0x500] sm:$0xf]
      %v548 = vld [vmem:[%s210 + $0x504] sm:$0xf]
      %v549 = vld [vmem:[%s210 + $0x508] sm:$0xf]
      %v550 = vld [vmem:[%s210 + $0x50c] sm:$0xf]
      %v551 = vld [vmem:[%s210 + $0x510] sm:$0xf]
      %v552 = vld [vmem:[%s210 + $0x514] sm:$0xf]
      %v553 = vld [vmem:[%s210 + $0x518] sm:$0xf]
      %v554 = vld [vmem:[%s210 + $0x51c] sm:$0xf]
      %v555 = vld [vmem:[%s210 + $0x520] sm:$0xf]
      %v556 = vld [vmem:[%s210 + $0x524] sm:$0xf]
      %v557 = vld [vmem:[%s210 + $0x528] sm:$0xf]
      %v558 = vld [vmem:[%s210 + $0x52c] sm:$0xf]
      %v559 = vld [vmem:[%s210 + $0x530] sm:$0xf]
      %v560 = vld [vmem:[%s210 + $0x534] sm:$0xf]
      %v561 = vld [vmem:[%s210 + $0x538] sm:$0xf]
      %v562 = vld [vmem:[%s210 + $0x53c] sm:$0xf]
      %v563 = vld [vmem:[%s210 + $0x540] sm:$0xf]
      %v564 = vld [vmem:[%s210 + $0x544] sm:$0xf]
      %v565 = vld [vmem:[%s210 + $0x548] sm:$0xf]
      %v566 = vld [vmem:[%s210 + $0x54c] sm:$0xf]
      %v567 = vld [vmem:[%s210 + $0x550] sm:$0xf]
      %v568 = vld [vmem:[%s210 + $0x554] sm:$0xf]
      %v569 = vld [vmem:[%s210 + $0x558] sm:$0xf]
      %v570 = vld [vmem:[%s210 + $0x55c] sm:$0xf]
      %v571 = vld [vmem:[%s210 + $0x560] sm:$0xf]
      %v572 = vld [vmem:[%s210 + $0x564] sm:$0xf]
      %v573 = vld [vmem:[%s210 + $0x568] sm:$0xf]
      %v574 = vld [vmem:[%s210 + $0x56c] sm:$0xf]
      %v575 = vld [vmem:[%s210 + $0x570] sm:$0xf]
      %v576 = vld [vmem:[%s210 + $0x574] sm:$0xf]
      %v577 = vld [vmem:[%s210 + $0x578] sm:$0xf]
      %v578 = vld [vmem:[%s210 + $0x57c] sm:$0xf]
      %v579 = vld [vmem:[%s210 + $0x580] sm:$0xf]
      %v580 = vld [vmem:[%s210 + $0x584] sm:$0xf]
      %v581 = vld [vmem:[%s210 + $0x588] sm:$0xf]
      %v582 = vld [vmem:[%s210 + $0x58c] sm:$0xf]
      %v583 = vld [vmem:[%s210 + $0x590] sm:$0xf]
      %v584 = vld [vmem:[%s210 + $0x594] sm:$0xf]
      %v585 = vld [vmem:[%s210 + $0x598] sm:$0xf]
      %v586 = vld [vmem:[%s210 + $0x59c] sm:$0xf]
      %v587 = vld [vmem:[%s210 + $0x5a0] sm:$0xf]
      %v588 = vld [vmem:[%s210 + $0x5a4] sm:$0xf]
      %v589 = vld [vmem:[%s210 + $0x5a8] sm:$0xf]
      %v590 = vld [vmem:[%s210 + $0x5ac] sm:$0xf]
      %v591 = vld [vmem:[%s210 + $0x5b0] sm:$0xf]
      %v592 = vld [vmem:[%s210 + $0x5b4] sm:$0xf]
      %v593 = vld [vmem:[%s210 + $0x5b8] sm:$0xf]
      %v594 = vld [vmem:[%s210 + $0x5bc] sm:$0xf]
      %v595 = vld [vmem:[%s210 + $0x5c0] sm:$0xf]
      %v596 = vld [vmem:[%s210 + $0x5c4] sm:$0xf]
      %v597 = vld [vmem:[%s210 + $0x5c8] sm:$0xf]
      %v598 = vld [vmem:[%s210 + $0x5cc] sm:$0xf]
      %v599 = vld [vmem:[%s210 + $0x5d0] sm:$0xf]
      %v600 = vld [vmem:[%s210 + $0x5d4] sm:$0xf]
      %v601 = vld [vmem:[%s210 + $0x5d8] sm:$0xf]
      %v602 = vld [vmem:[%s210 + $0x5dc] sm:$0xf]
      %v603 = vld [vmem:[%s210 + $0x5e0] sm:$0xf]
      %v604 = vld [vmem:[%s210 + $0x5e4] sm:$0xf]
      %v605 = vld [vmem:[%s210 + $0x5e8] sm:$0xf]
      %v606 = vld [vmem:[%s210 + $0x5ec] sm:$0xf]
      %v607 = vld [vmem:[%s210 + $0x5f0] sm:$0xf]
      %v608 = vld [vmem:[%s210 + $0x5f4] sm:$0xf]
      %v609 = vld [vmem:[%s210 + $0x5f8] sm:$0xf]
      %v610 = vld [vmem:[%s210 + $0x5fc] sm:$0xf]
      %v611 = vld [vmem:[%s210 + $0x600] sm:$0xf]
      %v612 = vld [vmem:[%s210 + $0x604] sm:$0xf]
      %v613 = vld [vmem:[%s210 + $0x608] sm:$0xf]
      %v614 = vld [vmem:[%s210 + $0x60c] sm:$0xf]
      %v615 = vld [vmem:[%s210 + $0x610] sm:$0xf]
      %v616 = vld [vmem:[%s210 + $0x614] sm:$0xf]
      %v617 = vld [vmem:[%s210 + $0x618] sm:$0xf]
      %v618 = vld [vmem:[%s210 + $0x61c] sm:$0xf]
      %v619 = vld [vmem:[%s210 + $0x620] sm:$0xf]
      %v620 = vld [vmem:[%s210 + $0x624] sm:$0xf]
      %v621 = vld [vmem:[%s210 + $0x628] sm:$0xf]
      %v622 = vld [vmem:[%s210 + $0x62c] sm:$0xf]
      %v623 = vld [vmem:[%s210 + $0x630] sm:$0xf]
      %v624 = vld [vmem:[%s210 + $0x634] sm:$0xf]
      %v625 = vld [vmem:[%s210 + $0x638] sm:$0xf]
      %v626 = vld [vmem:[%s210 + $0x63c] sm:$0xf]
      %v627 = vld [vmem:[%s210 + $0x640] sm:$0xf]
      %v628 = vld [vmem:[%s210 + $0x644] sm:$0xf]
      %v629 = vld [vmem:[%s210 + $0x648] sm:$0xf]
      %v630 = vld [vmem:[%s210 + $0x64c] sm:$0xf]
      %v631 = vld [vmem:[%s210 + $0x650] sm:$0xf]
      %v632 = vld [vmem:[%s210 + $0x654] sm:$0xf]
      %v633 = vld [vmem:[%s210 + $0x658] sm:$0xf]
      %v634 = vld [vmem:[%s210 + $0x65c] sm:$0xf]
      %v635 = vld [vmem:[%s210 + $0x660] sm:$0xf]
      %v636 = vld [vmem:[%s210 + $0x664] sm:$0xf]
      %v637 = vld [vmem:[%s210 + $0x668] sm:$0xf]
      %v638 = vld [vmem:[%s210 + $0x66c] sm:$0xf]
      %v639 = vld [vmem:[%s210 + $0x670] sm:$0xf]
      %v640 = vld [vmem:[%s210 + $0x674] sm:$0xf]
      %v641 = vld [vmem:[%s210 + $0x678] sm:$0xf]
      %v642 = vld [vmem:[%s210 + $0x67c] sm:$0xf]
      %v643 = vld [vmem:[%s210 + $0x680] sm:$0xf]
      %v644 = vld [vmem:[%s210 + $0x684] sm:$0xf]
      %v645 = vld [vmem:[%s210 + $0x688] sm:$0xf]
      %v646 = vld [vmem:[%s210 + $0x68c] sm:$0xf]
      %v647 = vld [vmem:[%s210 + $0x690] sm:$0xf]
      %v648 = vld [vmem:[%s210 + $0x694] sm:$0xf]
      %v649 = vld [vmem:[%s210 + $0x698] sm:$0xf]
      %v650 = vld [vmem:[%s210 + $0x69c] sm:$0xf]
      %v651 = vld [vmem:[%s210 + $0x6a0] sm:$0xf]
      %v652 = vld [vmem:[%s210 + $0x6a4] sm:$0xf]
      %v653 = vld [vmem:[%s210 + $0x6a8] sm:$0xf]
      %v654 = vld [vmem:[%s210 + $0x6ac] sm:$0xf]
      %v655 = vld [vmem:[%s210 + $0x6b0] sm:$0xf]
      %v656 = vld [vmem:[%s210 + $0x6b4] sm:$0xf]
      %v657 = vld [vmem:[%s210 + $0x6b8] sm:$0xf]
      %v658 = vld [vmem:[%s210 + $0x6bc] sm:$0xf]
      %v659 = vld [vmem:[%s210 + $0x6c0] sm:$0xf]
      %v660 = vld [vmem:[%s210 + $0x6c4] sm:$0xf]
      %v661 = vld [vmem:[%s210 + $0x6c8] sm:$0xf]
      %v662 = vld [vmem:[%s210 + $0x6cc] sm:$0xf]
      %v663 = vld [vmem:[%s210 + $0x6d0] sm:$0xf]
      %v664 = vld [vmem:[%s210 + $0x6d4] sm:$0xf]
      %v665 = vld [vmem:[%s210 + $0x6d8] sm:$0xf]
      %v666 = vld [vmem:[%s210 + $0x6dc] sm:$0xf]
      %v667 = vld [vmem:[%s210 + $0x6e0] sm:$0xf]
      %v668 = vld [vmem:[%s210 + $0x6e4] sm:$0xf]
      %v669 = vld [vmem:[%s210 + $0x6e8] sm:$0xf]
      %v670 = vld [vmem:[%s210 + $0x6ec] sm:$0xf]
      %v671 = vld [vmem:[%s210 + $0x6f0] sm:$0xf]
      %v672 = vld [vmem:[%s210 + $0x6f4] sm:$0xf]
      %v673 = vld [vmem:[%s210 + $0x6f8] sm:$0xf]
      %v674 = vld [vmem:[%s210 + $0x6fc] sm:$0xf]
      %v675 = vld [vmem:[%s210 + $0x700] sm:$0xf]
      %v676 = vld [vmem:[%s210 + $0x704] sm:$0xf]
      %v677 = vld [vmem:[%s210 + $0x708] sm:$0xf]
      %v678 = vld [vmem:[%s210 + $0x70c] sm:$0xf]
      %v679 = vld [vmem:[%s210 + $0x710] sm:$0xf]
      %v680 = vld [vmem:[%s210 + $0x714] sm:$0xf]
      %v681 = vld [vmem:[%s210 + $0x718] sm:$0xf]
      %v682 = vld [vmem:[%s210 + $0x71c] sm:$0xf]
      %v683 = vld [vmem:[%s210 + $0x720] sm:$0xf]
      %v684 = vld [vmem:[%s210 + $0x724] sm:$0xf]
      %v685 = vld [vmem:[%s210 + $0x728] sm:$0xf]
      %v686 = vld [vmem:[%s210 + $0x72c] sm:$0xf]
      %v687 = vld [vmem:[%s210 + $0x730] sm:$0xf]
      %v688 = vld [vmem:[%s210 + $0x734] sm:$0xf]
      %v689 = vld [vmem:[%s210 + $0x738] sm:$0xf]
      %v690 = vld [vmem:[%s210 + $0x73c] sm:$0xf]
      %v691 = vld [vmem:[%s210 + $0x740] sm:$0xf]
      %v692 = vld [vmem:[%s210 + $0x744] sm:$0xf]
      %v693 = vld [vmem:[%s210 + $0x748] sm:$0xf]
      %v694 = vld [vmem:[%s210 + $0x74c] sm:$0xf]
      %v695 = vld [vmem:[%s210 + $0x750] sm:$0xf]
      %v696 = vld [vmem:[%s210 + $0x754] sm:$0xf]
      %v697 = vld [vmem:[%s210 + $0x758] sm:$0xf]
      %v698 = vld [vmem:[%s210 + $0x75c] sm:$0xf]
      %v699 = vld [vmem:[%s210 + $0x760] sm:$0xf]
      %v700 = vld [vmem:[%s210 + $0x764] sm:$0xf]
      %v701 = vld [vmem:[%s210 + $0x768] sm:$0xf]
      %v702 = vld [vmem:[%s210 + $0x76c] sm:$0xf]
      %v703 = vld [vmem:[%s210 + $0x770] sm:$0xf]
      %v704 = vld [vmem:[%s210 + $0x774] sm:$0xf]
      %v705 = vld [vmem:[%s210 + $0x778] sm:$0xf]
      %v706 = vld [vmem:[%s210 + $0x77c] sm:$0xf]
      %v707 = vld [vmem:[%s210 + $0x780] sm:$0xf]
      %v708 = vld [vmem:[%s210 + $0x784] sm:$0xf]
      %v709 = vld [vmem:[%s210 + $0x788] sm:$0xf]
      %v710 = vld [vmem:[%s210 + $0x78c] sm:$0xf]
      %v711 = vld [vmem:[%s210 + $0x790] sm:$0xf]
      %v712 = vld [vmem:[%s210 + $0x794] sm:$0xf]
      %v713 = vld [vmem:[%s210 + $0x798] sm:$0xf]
      %v714 = vld [vmem:[%s210 + $0x79c] sm:$0xf]
      %v715 = vld [vmem:[%s210 + $0x7a0] sm:$0xf]
      %v716 = vld [vmem:[%s210 + $0x7a4] sm:$0xf]
      %v717 = vld [vmem:[%s210 + $0x7a8] sm:$0xf]
      %v718 = vld [vmem:[%s210 + $0x7ac] sm:$0xf]
      %v719 = vld [vmem:[%s210 + $0x7b0] sm:$0xf]
      %v720 = vld [vmem:[%s210 + $0x7b4] sm:$0xf]
      %v721 = vld [vmem:[%s210 + $0x7b8] sm:$0xf]
      %v722 = vld [vmem:[%s210 + $0x7bc] sm:$0xf]
      %v723 = vld [vmem:[%s210 + $0x7c0] sm:$0xf]
      %v724 = vld [vmem:[%s210 + $0x7c4] sm:$0xf]
      %v725 = vld [vmem:[%s210 + $0x7c8] sm:$0xf]
      %v726 = vld [vmem:[%s210 + $0x7cc] sm:$0xf]
      %v727 = vld [vmem:[%s210 + $0x7d0] sm:$0xf]
      %v728 = vld [vmem:[%s210 + $0x7d4] sm:$0xf]
      %v729 = vld [vmem:[%s210 + $0x7d8] sm:$0xf]
      %v730 = vld [vmem:[%s210 + $0x7dc] sm:$0xf]
      %v731 = vld [vmem:[%s210 + $0x7e0] sm:$0xf]
      %v732 = vld [vmem:[%s210 + $0x7e4] sm:$0xf]
      %v733 = vld [vmem:[%s210 + $0x7e8] sm:$0xf]
      %v734 = vld [vmem:[%s210 + $0x7ec] sm:$0xf]
      %v735 = vld [vmem:[%s210 + $0x7f0] sm:$0xf]
      %v736 = vld [vmem:[%s210 + $0x7f4] sm:$0xf]
      %v737 = vld [vmem:[%s210 + $0x7f8] sm:$0xf]
      %v738 = vld [vmem:[%s210 + $0x7fc] sm:$0xf]
      %740 = vst [vmem:[#allocation1] ss:$9 sm:$0xff] %v223
      %v741 = vld [vmem:[#allocation1] sm:$0xff]
      %v742 = vld [vmem:[#allocation1 + $0x9] sm:$0xff]
      %v743 = vld [vmem:[#allocation1 + $0x12] sm:$0xff]
      %v744 = vld [vmem:[#allocation1 + $0x1b] sm:$0xff]
      %v745 = vld [vmem:[#allocation1 + $0x24] sm:$0xff]
      %v746 = vld [vmem:[#allocation1 + $0x2d] sm:$0xff]
      %v747 = vld [vmem:[#allocation1 + $0x36] sm:$0xff]
      %v748 = vld [vmem:[#allocation1 + $0x3f] sm:$0xff]
      %750 = vst [vmem:[#allocation1] ss:$9 sm:$0xff] %v224
      %v751 = vld [vmem:[#allocation1] sm:$0xff]
      %v752 = vld [vmem:[#allocation1 + $0x9] sm:$0xff]
      %v753 = vld [vmem:[#allocation1 + $0x12] sm:$0xff]
      %v754 = vld [vmem:[#allocation1 + $0x1b] sm:$0xff]
      %v755 = vld [vmem:[#allocation1 + $0x24] sm:$0xff]
      %v756 = vld [vmem:[#allocation1 + $0x2d] sm:$0xff]
      %v757 = vld [vmem:[#allocation1 + $0x36] sm:$0xff]
      %v758 = vld [vmem:[#allocation1 + $0x3f] sm:$0xff]
      %760 = vst [vmem:[#allocation1] ss:$9 sm:$0xff] %v225
      %v761 = vld [vmem:[#allocation1] sm:$0xff]
      %v762 = vld [vmem:[#allocation1 + $0x9] sm:$0xff]
      %v763 = vld [vmem:[#allocation1 + $0x12] sm:$0xff]
      %v764 = vld [vmem:[#allocation1 + $0x1b] sm:$0xff]
      %v765 = vld [vmem:[#allocation1 + $0x24] sm:$0xff]
      %v766 = vld [vmem:[#allocation1 + $0x2d] sm:$0xff]
      %v767 = vld [vmem:[#allocation1 + $0x36] sm:$0xff]
      %v768 = vld [vmem:[#allocation1 + $0x3f] sm:$0xff]
      %770 = vst [vmem:[#allocation1] ss:$9 sm:$0xff] %v226
      %v771 = vld [vmem:[#allocation1] sm:$0xff]
      %v772 = vld [vmem:[#allocation1 + $0x9] sm:$0xff]
      %v773 = vld [vmem:[#allocation1 + $0x12] sm:$0xff]
      %v774 = vld [vmem:[#allocation1 + $0x1b] sm:$0xff]
      %v775 = vld [vmem:[#allocation1 + $0x24] sm:$0xff]
      %v776 = vld [vmem:[#allocation1 + $0x2d] sm:$0xff]
      %v777 = vld [vmem:[#allocation1 + $0x36] sm:$0xff]
      %v778 = vld [vmem:[#allocation1 + $0x3f] sm:$0xff]
      %v1323 = vunpack.c.l.b16 %v227
      %v1324 = vunpack.c.l.b16 %v228
      %v1325 = vunpack.c.l.b16 %v229
      %v1326 = vunpack.c.l.b16 %v230
      %v1327 = vunpack.c.l.b16 %v231
      %v1328 = vunpack.c.l.b16 %v232
      %v1329 = vunpack.c.l.b16 %v233
      %v1330 = vunpack.c.l.b16 %v234
      %v1331 = vunpack.c.l.b16 %v235
      %v1332 = vunpack.c.l.b16 %v236
      %v1333 = vunpack.c.l.b16 %v237
      %v1334 = vunpack.c.l.b16 %v238
      %v1335 = vunpack.c.l.b16 %v239
      %v1336 = vunpack.c.l.b16 %v240
      %v1337 = vunpack.c.l.b16 %v241
      %v1338 = vunpack.c.l.b16 %v242
      %v1339 = vunpack.c.l.b16 %v243
      %v1340 = vunpack.c.l.b16 %v244
      %v1341 = vunpack.c.l.b16 %v245
      %v1342 = vunpack.c.l.b16 %v246
      %v1343 = vunpack.c.l.b16 %v247
      %v1344 = vunpack.c.l.b16 %v248
      %v1345 = vunpack.c.l.b16 %v249
      %v1346 = vunpack.c.l.b16 %v250
      %v1347 = vunpack.c.l.b16 %v251
      %v1348 = vunpack.c.l.b16 %v252
      %v1349 = vunpack.c.l.b16 %v253
      %v1350 = vunpack.c.l.b16 %v254
      %v1351 = vunpack.c.l.b16 %v255
      %v1352 = vunpack.c.l.b16 %v256
      %v1353 = vunpack.c.l.b16 %v257
      %v1354 = vunpack.c.l.b16 %v258
      %v1355 = vunpack.c.l.b16 %v259
      %v1356 = vunpack.c.l.b16 %v260
      %v1357 = vunpack.c.l.b16 %v261
      %v1358 = vunpack.c.l.b16 %v262
      %v1359 = vunpack.c.l.b16 %v263
      %v1360 = vunpack.c.l.b16 %v264
      %v1361 = vunpack.c.l.b16 %v265
      %v1362 = vunpack.c.l.b16 %v266
      %v1363 = vunpack.c.l.b16 %v267
      %v1364 = vunpack.c.l.b16 %v268
      %v1365 = vunpack.c.l.b16 %v269
      %v1366 = vunpack.c.l.b16 %v270
      %v1367 = vunpack.c.l.b16 %v271
      %v1368 = vunpack.c.l.b16 %v272
      %v1369 = vunpack.c.l.b16 %v273
      %v1370 = vunpack.c.l.b16 %v274
      %v1371 = vunpack.c.l.b16 %v275
      %v1372 = vunpack.c.l.b16 %v276
      %v1373 = vunpack.c.l.b16 %v277
      %v1374 = vunpack.c.l.b16 %v278
      %v1375 = vunpack.c.l.b16 %v279
      %v1376 = vunpack.c.l.b16 %v280
      %v1377 = vunpack.c.l.b16 %v281
      %v1378 = vunpack.c.l.b16 %v282
      %v1379 = vunpack.c.l.b16 %v283
      %v1380 = vunpack.c.l.b16 %v284
      %v1381 = vunpack.c.l.b16 %v285
      %v1382 = vunpack.c.l.b16 %v286
      %v1383 = vunpack.c.l.b16 %v287
      %v1384 = vunpack.c.l.b16 %v288
      %v1385 = vunpack.c.l.b16 %v289
      %v1386 = vunpack.c.l.b16 %v290
      %v1387 = vunpack.c.l.b16 %v291
      %v1388 = vunpack.c.l.b16 %v292
      %v1389 = vunpack.c.l.b16 %v293
      %v1390 = vunpack.c.l.b16 %v294
      %v1391 = vunpack.c.l.b16 %v295
      %v1392 = vunpack.c.l.b16 %v296
      %v1393 = vunpack.c.l.b16 %v297
      %v1394 = vunpack.c.l.b16 %v298
      %v1395 = vunpack.c.l.b16 %v299
      %v1396 = vunpack.c.l.b16 %v300
      %v1397 = vunpack.c.l.b16 %v301
      %v1398 = vunpack.c.l.b16 %v302
      %v1399 = vunpack.c.l.b16 %v303
      %v1400 = vunpack.c.l.b16 %v304
      %v1401 = vunpack.c.l.b16 %v305
      %v1402 = vunpack.c.l.b16 %v306
      %v1403 = vunpack.c.l.b16 %v307
      %v1404 = vunpack.c.l.b16 %v308
      %v1405 = vunpack.c.l.b16 %v309
      %v1406 = vunpack.c.l.b16 %v310
      %v1407 = vunpack.c.l.b16 %v311
      %v1408 = vunpack.c.l.b16 %v312
      %v1409 = vunpack.c.l.b16 %v313
      %v1410 = vunpack.c.l.b16 %v314
      %v1411 = vunpack.c.l.b16 %v315
      %v1412 = vunpack.c.l.b16 %v316
      %v1413 = vunpack.c.l.b16 %v317
      %v1414 = vunpack.c.l.b16 %v318
      %v1415 = vunpack.c.l.b16 %v319
      %v1416 = vunpack.c.l.b16 %v320
      %v1417 = vunpack.c.l.b16 %v321
      %v1418 = vunpack.c.l.b16 %v322
      %v1419 = vunpack.c.l.b16 %v323
      %v1420 = vunpack.c.l.b16 %v324
      %v1421 = vunpack.c.l.b16 %v325
      %v1422 = vunpack.c.l.b16 %v326
      %v1423 = vunpack.c.l.b16 %v327
      %v1424 = vunpack.c.l.b16 %v328
      %v1425 = vunpack.c.l.b16 %v329
      %v1426 = vunpack.c.l.b16 %v330
      %v1427 = vunpack.c.l.b16 %v331
      %v1428 = vunpack.c.l.b16 %v332
      %v1429 = vunpack.c.l.b16 %v333
      %v1430 = vunpack.c.l.b16 %v334
      %v1431 = vunpack.c.l.b16 %v335
      %v1432 = vunpack.c.l.b16 %v336
      %v1433 = vunpack.c.l.b16 %v337
      %v1434 = vunpack.c.l.b16 %v338
      %v1435 = vunpack.c.l.b16 %v339
      %v1436 = vunpack.c.l.b16 %v340
      %v1437 = vunpack.c.l.b16 %v341
      %v1438 = vunpack.c.l.b16 %v342
      %v1439 = vunpack.c.l.b16 %v343
      %v1440 = vunpack.c.l.b16 %v344
      %v1441 = vunpack.c.l.b16 %v345
      %v1442 = vunpack.c.l.b16 %v346
      %v1443 = vunpack.c.l.b16 %v347
      %v1444 = vunpack.c.l.b16 %v348
      %v1445 = vunpack.c.l.b16 %v349
      %v1446 = vunpack.c.l.b16 %v350
      %v1447 = vunpack.c.l.b16 %v351
      %v1448 = vunpack.c.l.b16 %v352
      %v1449 = vunpack.c.l.b16 %v353
      %v1450 = vunpack.c.l.b16 %v354
      %v1451 = vunpack.c.l.b16 %v355
      %v1452 = vunpack.c.l.b16 %v356
      %v1453 = vunpack.c.l.b16 %v357
      %v1454 = vunpack.c.l.b16 %v358
      %v1455 = vunpack.c.l.b16 %v359
      %v1456 = vunpack.c.l.b16 %v360
      %v1457 = vunpack.c.l.b16 %v361
      %v1458 = vunpack.c.l.b16 %v362
      %v1459 = vunpack.c.l.b16 %v363
      %v1460 = vunpack.c.l.b16 %v364
      %v1461 = vunpack.c.l.b16 %v365
      %v1462 = vunpack.c.l.b16 %v366
      %v1463 = vunpack.c.l.b16 %v367
      %v1464 = vunpack.c.l.b16 %v368
      %v1465 = vunpack.c.l.b16 %v369
      %v1466 = vunpack.c.l.b16 %v370
      %v1467 = vunpack.c.l.b16 %v371
      %v1468 = vunpack.c.l.b16 %v372
      %v1469 = vunpack.c.l.b16 %v373
      %v1470 = vunpack.c.l.b16 %v374
      %v1471 = vunpack.c.l.b16 %v375
      %v1472 = vunpack.c.l.b16 %v376
      %v1473 = vunpack.c.l.b16 %v377
      %v1474 = vunpack.c.l.b16 %v378
      %v1475 = vunpack.c.l.b16 %v379
      %v1476 = vunpack.c.l.b16 %v380
      %v1477 = vunpack.c.l.b16 %v381
      %v1478 = vunpack.c.l.b16 %v382
      %v1479 = vunpack.c.l.b16 %v383
      %v1480 = vunpack.c.l.b16 %v384
      %v1481 = vunpack.c.l.b16 %v385
      %v1482 = vunpack.c.l.b16 %v386
      %v1483 = vunpack.c.l.b16 %v387
      %v1484 = vunpack.c.l.b16 %v388
      %v1485 = vunpack.c.l.b16 %v389
      %v1486 = vunpack.c.l.b16 %v390
      %v1487 = vunpack.c.l.b16 %v391
      %v1488 = vunpack.c.l.b16 %v392
      %v1489 = vunpack.c.l.b16 %v393
      %v1490 = vunpack.c.l.b16 %v394
      %v1491 = vunpack.c.l.b16 %v395
      %v1492 = vunpack.c.l.b16 %v396
      %v1493 = vunpack.c.l.b16 %v397
      %v1494 = vunpack.c.l.b16 %v398
      %v1495 = vunpack.c.l.b16 %v399
      %v1496 = vunpack.c.l.b16 %v400
      %v1497 = vunpack.c.l.b16 %v401
      %v1498 = vunpack.c.l.b16 %v402
      %v1499 = vunpack.c.l.b16 %v403
      %v1500 = vunpack.c.l.b16 %v404
      %v1501 = vunpack.c.l.b16 %v405
      %v1502 = vunpack.c.l.b16 %v406
      %v1503 = vunpack.c.l.b16 %v407
      %v1504 = vunpack.c.l.b16 %v408
      %v1505 = vunpack.c.l.b16 %v409
      %v1506 = vunpack.c.l.b16 %v410
      %v1507 = vunpack.c.l.b16 %v411
      %v1508 = vunpack.c.l.b16 %v412
      %v1509 = vunpack.c.l.b16 %v413
      %v1510 = vunpack.c.l.b16 %v414
      %v1511 = vunpack.c.l.b16 %v415
      %v1512 = vunpack.c.l.b16 %v416
      %v1513 = vunpack.c.l.b16 %v417
      %v1514 = vunpack.c.l.b16 %v418
      %v1515 = vunpack.c.l.b16 %v419
      %v1516 = vunpack.c.l.b16 %v420
      %v1517 = vunpack.c.l.b16 %v421
      %v1518 = vunpack.c.l.b16 %v422
      %v1519 = vunpack.c.l.b16 %v423
      %v1520 = vunpack.c.l.b16 %v424
      %v1521 = vunpack.c.l.b16 %v425
      %v1522 = vunpack.c.l.b16 %v426
      %v1523 = vunpack.c.l.b16 %v427
      %v1524 = vunpack.c.l.b16 %v428
      %v1525 = vunpack.c.l.b16 %v429
      %v1526 = vunpack.c.l.b16 %v430
      %v1527 = vunpack.c.l.b16 %v431
      %v1528 = vunpack.c.l.b16 %v432
      %v1529 = vunpack.c.l.b16 %v433
      %v1530 = vunpack.c.l.b16 %v434
      %v1531 = vunpack.c.l.b16 %v435
      %v1532 = vunpack.c.l.b16 %v436
      %v1533 = vunpack.c.l.b16 %v437
      %v1534 = vunpack.c.l.b16 %v438
      %v1535 = vunpack.c.l.b16 %v439
      %v1536 = vunpack.c.l.b16 %v440
      %v1537 = vunpack.c.l.b16 %v441
      %v1538 = vunpack.c.l.b16 %v442
      %v1539 = vunpack.c.l.b16 %v443
      %v1540 = vunpack.c.l.b16 %v444
      %v1541 = vunpack.c.l.b16 %v445
      %v1542 = vunpack.c.l.b16 %v446
      %v1543 = vunpack.c.l.b16 %v447
      %v1544 = vunpack.c.l.b16 %v448
      %v1545 = vunpack.c.l.b16 %v449
      %v1546 = vunpack.c.l.b16 %v450
      %v1547 = vunpack.c.l.b16 %v451
      %v1548 = vunpack.c.l.b16 %v452
      %v1549 = vunpack.c.l.b16 %v453
      %v1550 = vunpack.c.l.b16 %v454
      %v1551 = vunpack.c.l.b16 %v455
      %v1552 = vunpack.c.l.b16 %v456
      %v1553 = vunpack.c.l.b16 %v457
      %v1554 = vunpack.c.l.b16 %v458
      %v1555 = vunpack.c.l.b16 %v459
      %v1556 = vunpack.c.l.b16 %v460
      %v1557 = vunpack.c.l.b16 %v461
      %v1558 = vunpack.c.l.b16 %v462
      %v1559 = vunpack.c.l.b16 %v463
      %v1560 = vunpack.c.l.b16 %v464
      %v1561 = vunpack.c.l.b16 %v465
      %v1562 = vunpack.c.l.b16 %v466
      %v1563 = vunpack.c.l.b16 %v467
      %v1564 = vunpack.c.l.b16 %v468
      %v1565 = vunpack.c.l.b16 %v469
      %v1566 = vunpack.c.l.b16 %v470
      %v1567 = vunpack.c.l.b16 %v471
      %v1568 = vunpack.c.l.b16 %v472
      %v1569 = vunpack.c.l.b16 %v473
      %v1570 = vunpack.c.l.b16 %v474
      %v1571 = vunpack.c.l.b16 %v475
      %v1572 = vunpack.c.l.b16 %v476
      %v1573 = vunpack.c.l.b16 %v477
      %v1574 = vunpack.c.l.b16 %v478
      %v1575 = vunpack.c.l.b16 %v479
      %v1576 = vunpack.c.l.b16 %v480
      %v1577 = vunpack.c.l.b16 %v481
      %v1578 = vunpack.c.l.b16 %v482
      %v1579 = vunpack.c.l.b16 %v483
      %v1580 = vunpack.c.l.b16 %v484
      %v1581 = vunpack.c.l.b16 %v485
      %v1582 = vunpack.c.l.b16 %v486
      %v1583 = vunpack.c.l.b16 %v487
      %v1584 = vunpack.c.l.b16 %v488
      %v1585 = vunpack.c.l.b16 %v489
      %v1586 = vunpack.c.l.b16 %v490
      %v1587 = vunpack.c.l.b16 %v491
      %v1588 = vunpack.c.l.b16 %v492
      %v1589 = vunpack.c.l.b16 %v493
      %v1590 = vunpack.c.l.b16 %v494
      %v1591 = vunpack.c.l.b16 %v495
      %v1592 = vunpack.c.l.b16 %v496
      %v1593 = vunpack.c.l.b16 %v497
      %v1594 = vunpack.c.l.b16 %v498
      %v1595 = vunpack.c.l.b16 %v499
      %v1596 = vunpack.c.l.b16 %v500
      %v1597 = vunpack.c.l.b16 %v501
      %v1598 = vunpack.c.l.b16 %v502
      %v1599 = vunpack.c.l.b16 %v503
      %v1600 = vunpack.c.l.b16 %v504
      %v1601 = vunpack.c.l.b16 %v505
      %v1602 = vunpack.c.l.b16 %v506
      %v1603 = vunpack.c.l.b16 %v507
      %v1604 = vunpack.c.l.b16 %v508
      %v1605 = vunpack.c.l.b16 %v509
      %v1606 = vunpack.c.l.b16 %v510
      %v1607 = vunpack.c.l.b16 %v511
      %v1608 = vunpack.c.l.b16 %v512
      %v1609 = vunpack.c.l.b16 %v513
      %v1610 = vunpack.c.l.b16 %v514
      %v1611 = vunpack.c.l.b16 %v515
      %v1612 = vunpack.c.l.b16 %v516
      %v1613 = vunpack.c.l.b16 %v517
      %v1614 = vunpack.c.l.b16 %v518
      %v1615 = vunpack.c.l.b16 %v519
      %v1616 = vunpack.c.l.b16 %v520
      %v1617 = vunpack.c.l.b16 %v521
      %v1618 = vunpack.c.l.b16 %v522
      %v1619 = vunpack.c.l.b16 %v523
      %v1620 = vunpack.c.l.b16 %v524
      %v1621 = vunpack.c.l.b16 %v525
      %v1622 = vunpack.c.l.b16 %v526
      %v1623 = vunpack.c.l.b16 %v527
      %v1624 = vunpack.c.l.b16 %v528
      %v1625 = vunpack.c.l.b16 %v529
      %v1626 = vunpack.c.l.b16 %v530
      %v1627 = vunpack.c.l.b16 %v531
      %v1628 = vunpack.c.l.b16 %v532
      %v1629 = vunpack.c.l.b16 %v533
      %v1630 = vunpack.c.l.b16 %v534
      %v1631 = vunpack.c.l.b16 %v535
      %v1632 = vunpack.c.l.b16 %v536
      %v1633 = vunpack.c.l.b16 %v537
      %v1634 = vunpack.c.l.b16 %v538
      %v1635 = vunpack.c.l.b16 %v539
      %v1636 = vunpack.c.l.b16 %v540
      %v1637 = vunpack.c.l.b16 %v541
      %v1638 = vunpack.c.l.b16 %v542
      %v1639 = vunpack.c.l.b16 %v543
      %v1640 = vunpack.c.l.b16 %v544
      %v1641 = vunpack.c.l.b16 %v545
      %v1642 = vunpack.c.l.b16 %v546
      %v1643 = vunpack.c.l.b16 %v547
      %v1644 = vunpack.c.l.b16 %v548
      %v1645 = vunpack.c.l.b16 %v549
      %v1646 = vunpack.c.l.b16 %v550
      %v1647 = vunpack.c.l.b16 %v551
      %v1648 = vunpack.c.l.b16 %v552
      %v1649 = vunpack.c.l.b16 %v553
      %v1650 = vunpack.c.l.b16 %v554
      %v1651 = vunpack.c.l.b16 %v555
      %v1652 = vunpack.c.l.b16 %v556
      %v1653 = vunpack.c.l.b16 %v557
      %v1654 = vunpack.c.l.b16 %v558
      %v1655 = vunpack.c.l.b16 %v559
      %v1656 = vunpack.c.l.b16 %v560
      %v1657 = vunpack.c.l.b16 %v561
      %v1658 = vunpack.c.l.b16 %v562
      %v1659 = vunpack.c.l.b16 %v563
      %v1660 = vunpack.c.l.b16 %v564
      %v1661 = vunpack.c.l.b16 %v565
      %v1662 = vunpack.c.l.b16 %v566
      %v1663 = vunpack.c.l.b16 %v567
      %v1664 = vunpack.c.l.b16 %v568
      %v1665 = vunpack.c.l.b16 %v569
      %v1666 = vunpack.c.l.b16 %v570
      %v1667 = vunpack.c.l.b16 %v571
      %v1668 = vunpack.c.l.b16 %v572
      %v1669 = vunpack.c.l.b16 %v573
      %v1670 = vunpack.c.l.b16 %v574
      %v1671 = vunpack.c.l.b16 %v575
      %v1672 = vunpack.c.l.b16 %v576
      %v1673 = vunpack.c.l.b16 %v577
      %v1674 = vunpack.c.l.b16 %v578
      %v1675 = vunpack.c.l.b16 %v579
      %v1676 = vunpack.c.l.b16 %v580
      %v1677 = vunpack.c.l.b16 %v581
      %v1678 = vunpack.c.l.b16 %v582
      %v1679 = vunpack.c.l.b16 %v583
      %v1680 = vunpack.c.l.b16 %v584
      %v1681 = vunpack.c.l.b16 %v585
      %v1682 = vunpack.c.l.b16 %v586
      %v1683 = vunpack.c.l.b16 %v587
      %v1684 = vunpack.c.l.b16 %v588
      %v1685 = vunpack.c.l.b16 %v589
      %v1686 = vunpack.c.l.b16 %v590
      %v1687 = vunpack.c.l.b16 %v591
      %v1688 = vunpack.c.l.b16 %v592
      %v1689 = vunpack.c.l.b16 %v593
      %v1690 = vunpack.c.l.b16 %v594
      %v1691 = vunpack.c.l.b16 %v595
      %v1692 = vunpack.c.l.b16 %v596
      %v1693 = vunpack.c.l.b16 %v597
      %v1694 = vunpack.c.l.b16 %v598
      %v1695 = vunpack.c.l.b16 %v599
      %v1696 = vunpack.c.l.b16 %v600
      %v1697 = vunpack.c.l.b16 %v601
      %v1698 = vunpack.c.l.b16 %v602
      %v1699 = vunpack.c.l.b16 %v603
      %v1700 = vunpack.c.l.b16 %v604
      %v1701 = vunpack.c.l.b16 %v605
      %v1702 = vunpack.c.l.b16 %v606
      %v1703 = vunpack.c.l.b16 %v607
      %v1704 = vunpack.c.l.b16 %v608
      %v1705 = vunpack.c.l.b16 %v609
      %v1706 = vunpack.c.l.b16 %v610
      %v1707 = vunpack.c.l.b16 %v611
      %v1708 = vunpack.c.l.b16 %v612
      %v1709 = vunpack.c.l.b16 %v613
      %v1710 = vunpack.c.l.b16 %v614
      %v1711 = vunpack.c.l.b16 %v615
      %v1712 = vunpack.c.l.b16 %v616
      %v1713 = vunpack.c.l.b16 %v617
      %v1714 = vunpack.c.l.b16 %v618
      %v1715 = vunpack.c.l.b16 %v619
      %v1716 = vunpack.c.l.b16 %v620
      %v1717 = vunpack.c.l.b16 %v621
      %v1718 = vunpack.c.l.b16 %v622
      %v1719 = vunpack.c.l.b16 %v623
      %v1720 = vunpack.c.l.b16 %v624
      %v1721 = vunpack.c.l.b16 %v625
      %v1722 = vunpack.c.l.b16 %v626
      %v1723 = vunpack.c.l.b16 %v627
      %v1724 = vunpack.c.l.b16 %v628
      %v1725 = vunpack.c.l.b16 %v629
      %v1726 = vunpack.c.l.b16 %v630
      %v1727 = vunpack.c.l.b16 %v631
      %v1728 = vunpack.c.l.b16 %v632
      %v1729 = vunpack.c.l.b16 %v633
      %v1730 = vunpack.c.l.b16 %v634
      %v1731 = vunpack.c.l.b16 %v635
      %v1732 = vunpack.c.l.b16 %v636
      %v1733 = vunpack.c.l.b16 %v637
      %v1734 = vunpack.c.l.b16 %v638
      %v1735 = vunpack.c.l.b16 %v639
      %v1736 = vunpack.c.l.b16 %v640
      %v1737 = vunpack.c.l.b16 %v641
      %v1738 = vunpack.c.l.b16 %v642
      %v1739 = vunpack.c.l.b16 %v643
      %v1740 = vunpack.c.l.b16 %v644
      %v1741 = vunpack.c.l.b16 %v645
      %v1742 = vunpack.c.l.b16 %v646
      %v1743 = vunpack.c.l.b16 %v647
      %v1744 = vunpack.c.l.b16 %v648
      %v1745 = vunpack.c.l.b16 %v649
      %v1746 = vunpack.c.l.b16 %v650
      %v1747 = vunpack.c.l.b16 %v651
      %v1748 = vunpack.c.l.b16 %v652
      %v1749 = vunpack.c.l.b16 %v653
      %v1750 = vunpack.c.l.b16 %v654
      %v1751 = vunpack.c.l.b16 %v655
      %v1752 = vunpack.c.l.b16 %v656
      %v1753 = vunpack.c.l.b16 %v657
      %v1754 = vunpack.c.l.b16 %v658
      %v1755 = vunpack.c.l.b16 %v659
      %v1756 = vunpack.c.l.b16 %v660
      %v1757 = vunpack.c.l.b16 %v661
      %v1758 = vunpack.c.l.b16 %v662
      %v1759 = vunpack.c.l.b16 %v663
      %v1760 = vunpack.c.l.b16 %v664
      %v1761 = vunpack.c.l.b16 %v665
      %v1762 = vunpack.c.l.b16 %v666
      %v1763 = vunpack.c.l.b16 %v667
      %v1764 = vunpack.c.l.b16 %v668
      %v1765 = vunpack.c.l.b16 %v669
      %v1766 = vunpack.c.l.b16 %v670
      %v1767 = vunpack.c.l.b16 %v671
      %v1768 = vunpack.c.l.b16 %v672
      %v1769 = vunpack.c.l.b16 %v673
      %v1770 = vunpack.c.l.b16 %v674
      %v1771 = vunpack.c.l.b16 %v675
      %v1772 = vunpack.c.l.b16 %v676
      %v1773 = vunpack.c.l.b16 %v677
      %v1774 = vunpack.c.l.b16 %v678
      %v1775 = vunpack.c.l.b16 %v679
      %v1776 = vunpack.c.l.b16 %v680
      %v1777 = vunpack.c.l.b16 %v681
      %v1778 = vunpack.c.l.b16 %v682
      %v1779 = vunpack.c.l.b16 %v683
      %v1780 = vunpack.c.l.b16 %v684
      %v1781 = vunpack.c.l.b16 %v685
      %v1782 = vunpack.c.l.b16 %v686
      %v1783 = vunpack.c.l.b16 %v687
      %v1784 = vunpack.c.l.b16 %v688
      %v1785 = vunpack.c.l.b16 %v689
      %v1786 = vunpack.c.l.b16 %v690
      %v1787 = vunpack.c.l.b16 %v691
      %v1788 = vunpack.c.l.b16 %v692
      %v1789 = vunpack.c.l.b16 %v693
      %v1790 = vunpack.c.l.b16 %v694
      %v1791 = vunpack.c.l.b16 %v695
      %v1792 = vunpack.c.l.b16 %v696
      %v1793 = vunpack.c.l.b16 %v697
      %v1794 = vunpack.c.l.b16 %v698
      %v1795 = vunpack.c.l.b16 %v699
      %v1796 = vunpack.c.l.b16 %v700
      %v1797 = vunpack.c.l.b16 %v701
      %v1798 = vunpack.c.l.b16 %v702
      %v1799 = vunpack.c.l.b16 %v703
      %v1800 = vunpack.c.l.b16 %v704
      %v1801 = vunpack.c.l.b16 %v705
      %v1802 = vunpack.c.l.b16 %v706
      %v1803 = vunpack.c.l.b16 %v707
      %v1804 = vunpack.c.l.b16 %v708
      %v1805 = vunpack.c.l.b16 %v709
      %v1806 = vunpack.c.l.b16 %v710
      %v1807 = vunpack.c.l.b16 %v711
      %v1808 = vunpack.c.l.b16 %v712
      %v1809 = vunpack.c.l.b16 %v713
      %v1810 = vunpack.c.l.b16 %v714
      %v1811 = vunpack.c.l.b16 %v715
      %v1812 = vunpack.c.l.b16 %v716
      %v1813 = vunpack.c.l.b16 %v717
      %v1814 = vunpack.c.l.b16 %v718
      %v1815 = vunpack.c.l.b16 %v719
      %v1816 = vunpack.c.l.b16 %v720
      %v1817 = vunpack.c.l.b16 %v721
      %v1818 = vunpack.c.l.b16 %v722
      %v1819 = vunpack.c.l.b16 %v723
      %v1820 = vunpack.c.l.b16 %v724
      %v1821 = vunpack.c.l.b16 %v725
      %v1822 = vunpack.c.l.b16 %v726
      %v1823 = vunpack.c.l.b16 %v727
      %v1824 = vunpack.c.l.b16 %v728
      %v1825 = vunpack.c.l.b16 %v729
      %v1826 = vunpack.c.l.b16 %v730
      %v1827 = vunpack.c.l.b16 %v731
      %v1828 = vunpack.c.l.b16 %v732
      %v1829 = vunpack.c.l.b16 %v733
      %v1830 = vunpack.c.l.b16 %v734
      %v1831 = vunpack.c.l.b16 %v735
      %v1832 = vunpack.c.l.b16 %v736
      %v1833 = vunpack.c.l.b16 %v737
      %v1834 = vunpack.c.l.b16 %v738
      %v1835 = vpack.c.b16 %v1324, %v1323
      %v1836 = vpack.c.b16 %v1326, %v1325
      %v1837 = vpack.c.b16 %v1328, %v1327
      %v1838 = vpack.c.b16 %v1330, %v1329
      %v1839 = vpack.c.b16 %v1332, %v1331
      %v1840 = vpack.c.b16 %v1334, %v1333
      %v1841 = vpack.c.b16 %v1336, %v1335
      %v1842 = vpack.c.b16 %v1338, %v1337
      %v1843 = vpack.c.b16 %v1340, %v1339
      %v1844 = vpack.c.b16 %v1342, %v1341
      %v1845 = vpack.c.b16 %v1344, %v1343
      %v1846 = vpack.c.b16 %v1346, %v1345
      %v1847 = vpack.c.b16 %v1348, %v1347
      %v1848 = vpack.c.b16 %v1350, %v1349
      %v1849 = vpack.c.b16 %v1352, %v1351
      %v1850 = vpack.c.b16 %v1354, %v1353
      %v1851 = vpack.c.b16 %v1356, %v1355
      %v1852 = vpack.c.b16 %v1358, %v1357
      %v1853 = vpack.c.b16 %v1360, %v1359
      %v1854 = vpack.c.b16 %v1362, %v1361
      %v1855 = vpack.c.b16 %v1364, %v1363
      %v1856 = vpack.c.b16 %v1366, %v1365
      %v1857 = vpack.c.b16 %v1368, %v1367
      %v1858 = vpack.c.b16 %v1370, %v1369
      %v1859 = vpack.c.b16 %v1372, %v1371
      %v1860 = vpack.c.b16 %v1374, %v1373
      %v1861 = vpack.c.b16 %v1376, %v1375
      %v1862 = vpack.c.b16 %v1378, %v1377
      %v1863 = vpack.c.b16 %v1380, %v1379
      %v1864 = vpack.c.b16 %v1382, %v1381
      %v1865 = vpack.c.b16 %v1384, %v1383
      %v1866 = vpack.c.b16 %v1386, %v1385
      %v1867 = vpack.c.b16 %v1388, %v1387
      %v1868 = vpack.c.b16 %v1390, %v1389
      %v1869 = vpack.c.b16 %v1392, %v1391
      %v1870 = vpack.c.b16 %v1394, %v1393
      %v1871 = vpack.c.b16 %v1396, %v1395
      %v1872 = vpack.c.b16 %v1398, %v1397
      %v1873 = vpack.c.b16 %v1400, %v1399
      %v1874 = vpack.c.b16 %v1402, %v1401
      %v1875 = vpack.c.b16 %v1404, %v1403
      %v1876 = vpack.c.b16 %v1406, %v1405
      %v1877 = vpack.c.b16 %v1408, %v1407
      %v1878 = vpack.c.b16 %v1410, %v1409
      %v1879 = vpack.c.b16 %v1412, %v1411
      %v1880 = vpack.c.b16 %v1414, %v1413
      %v1881 = vpack.c.b16 %v1416, %v1415
      %v1882 = vpack.c.b16 %v1418, %v1417
      %v1883 = vpack.c.b16 %v1420, %v1419
      %v1884 = vpack.c.b16 %v1422, %v1421
      %v1885 = vpack.c.b16 %v1424, %v1423
      %v1886 = vpack.c.b16 %v1426, %v1425
      %v1887 = vpack.c.b16 %v1428, %v1427
      %v1888 = vpack.c.b16 %v1430, %v1429
      %v1889 = vpack.c.b16 %v1432, %v1431
      %v1890 = vpack.c.b16 %v1434, %v1433
      %v1891 = vpack.c.b16 %v1436, %v1435
      %v1892 = vpack.c.b16 %v1438, %v1437
      %v1893 = vpack.c.b16 %v1440, %v1439
      %v1894 = vpack.c.b16 %v1442, %v1441
      %v1895 = vpack.c.b16 %v1444, %v1443
      %v1896 = vpack.c.b16 %v1446, %v1445
      %v1897 = vpack.c.b16 %v1448, %v1447
      %v1898 = vpack.c.b16 %v1450, %v1449
      %v1899 = vpack.c.b16 %v1452, %v1451
      %v1900 = vpack.c.b16 %v1454, %v1453
      %v1901 = vpack.c.b16 %v1456, %v1455
      %v1902 = vpack.c.b16 %v1458, %v1457
      %v1903 = vpack.c.b16 %v1460, %v1459
      %v1904 = vpack.c.b16 %v1462, %v1461
      %v1905 = vpack.c.b16 %v1464, %v1463
      %v1906 = vpack.c.b16 %v1466, %v1465
      %v1907 = vpack.c.b16 %v1468, %v1467
      %v1908 = vpack.c.b16 %v1470, %v1469
      %v1909 = vpack.c.b16 %v1472, %v1471
      %v1910 = vpack.c.b16 %v1474, %v1473
      %v1911 = vpack.c.b16 %v1476, %v1475
      %v1912 = vpack.c.b16 %v1478, %v1477
      %v1913 = vpack.c.b16 %v1480, %v1479
      %v1914 = vpack.c.b16 %v1482, %v1481
      %v1915 = vpack.c.b16 %v1484, %v1483
      %v1916 = vpack.c.b16 %v1486, %v1485
      %v1917 = vpack.c.b16 %v1488, %v1487
      %v1918 = vpack.c.b16 %v1490, %v1489
      %v1919 = vpack.c.b16 %v1492, %v1491
      %v1920 = vpack.c.b16 %v1494, %v1493
      %v1921 = vpack.c.b16 %v1496, %v1495
      %v1922 = vpack.c.b16 %v1498, %v1497
      %v1923 = vpack.c.b16 %v1500, %v1499
      %v1924 = vpack.c.b16 %v1502, %v1501
      %v1925 = vpack.c.b16 %v1504, %v1503
      %v1926 = vpack.c.b16 %v1506, %v1505
      %v1927 = vpack.c.b16 %v1508, %v1507
      %v1928 = vpack.c.b16 %v1510, %v1509
      %v1929 = vpack.c.b16 %v1512, %v1511
      %v1930 = vpack.c.b16 %v1514, %v1513
      %v1931 = vpack.c.b16 %v1516, %v1515
      %v1932 = vpack.c.b16 %v1518, %v1517
      %v1933 = vpack.c.b16 %v1520, %v1519
      %v1934 = vpack.c.b16 %v1522, %v1521
      %v1935 = vpack.c.b16 %v1524, %v1523
      %v1936 = vpack.c.b16 %v1526, %v1525
      %v1937 = vpack.c.b16 %v1528, %v1527
      %v1938 = vpack.c.b16 %v1530, %v1529
      %v1939 = vpack.c.b16 %v1532, %v1531
      %v1940 = vpack.c.b16 %v1534, %v1533
      %v1941 = vpack.c.b16 %v1536, %v1535
      %v1942 = vpack.c.b16 %v1538, %v1537
      %v1943 = vpack.c.b16 %v1540, %v1539
      %v1944 = vpack.c.b16 %v1542, %v1541
      %v1945 = vpack.c.b16 %v1544, %v1543
      %v1946 = vpack.c.b16 %v1546, %v1545
      %v1947 = vpack.c.b16 %v1548, %v1547
      %v1948 = vpack.c.b16 %v1550, %v1549
      %v1949 = vpack.c.b16 %v1552, %v1551
      %v1950 = vpack.c.b16 %v1554, %v1553
      %v1951 = vpack.c.b16 %v1556, %v1555
      %v1952 = vpack.c.b16 %v1558, %v1557
      %v1953 = vpack.c.b16 %v1560, %v1559
      %v1954 = vpack.c.b16 %v1562, %v1561
      %v1955 = vpack.c.b16 %v1564, %v1563
      %v1956 = vpack.c.b16 %v1566, %v1565
      %v1957 = vpack.c.b16 %v1568, %v1567
      %v1958 = vpack.c.b16 %v1570, %v1569
      %v1959 = vpack.c.b16 %v1572, %v1571
      %v1960 = vpack.c.b16 %v1574, %v1573
      %v1961 = vpack.c.b16 %v1576, %v1575
      %v1962 = vpack.c.b16 %v1578, %v1577
      %v1963 = vpack.c.b16 %v1580, %v1579
      %v1964 = vpack.c.b16 %v1582, %v1581
      %v1965 = vpack.c.b16 %v1584, %v1583
      %v1966 = vpack.c.b16 %v1586, %v1585
      %v1967 = vpack.c.b16 %v1588, %v1587
      %v1968 = vpack.c.b16 %v1590, %v1589
      %v1969 = vpack.c.b16 %v1592, %v1591
      %v1970 = vpack.c.b16 %v1594, %v1593
      %v1971 = vpack.c.b16 %v1596, %v1595
      %v1972 = vpack.c.b16 %v1598, %v1597
      %v1973 = vpack.c.b16 %v1600, %v1599
      %v1974 = vpack.c.b16 %v1602, %v1601
      %v1975 = vpack.c.b16 %v1604, %v1603
      %v1976 = vpack.c.b16 %v1606, %v1605
      %v1977 = vpack.c.b16 %v1608, %v1607
      %v1978 = vpack.c.b16 %v1610, %v1609
      %v1979 = vpack.c.b16 %v1612, %v1611
      %v1980 = vpack.c.b16 %v1614, %v1613
      %v1981 = vpack.c.b16 %v1616, %v1615
      %v1982 = vpack.c.b16 %v1618, %v1617
      %v1983 = vpack.c.b16 %v1620, %v1619
      %v1984 = vpack.c.b16 %v1622, %v1621
      %v1985 = vpack.c.b16 %v1624, %v1623
      %v1986 = vpack.c.b16 %v1626, %v1625
      %v1987 = vpack.c.b16 %v1628, %v1627
      %v1988 = vpack.c.b16 %v1630, %v1629
      %v1989 = vpack.c.b16 %v1632, %v1631
      %v1990 = vpack.c.b16 %v1634, %v1633
      %v1991 = vpack.c.b16 %v1636, %v1635
      %v1992 = vpack.c.b16 %v1638, %v1637
      %v1993 = vpack.c.b16 %v1640, %v1639
      %v1994 = vpack.c.b16 %v1642, %v1641
      %v1995 = vpack.c.b16 %v1644, %v1643
      %v1996 = vpack.c.b16 %v1646, %v1645
      %v1997 = vpack.c.b16 %v1648, %v1647
      %v1998 = vpack.c.b16 %v1650, %v1649
      %v1999 = vpack.c.b16 %v1652, %v1651
      %v2000 = vpack.c.b16 %v1654, %v1653
      %v2001 = vpack.c.b16 %v1656, %v1655
      %v2002 = vpack.c.b16 %v1658, %v1657
      %v2003 = vpack.c.b16 %v1660, %v1659
      %v2004 = vpack.c.b16 %v1662, %v1661
      %v2005 = vpack.c.b16 %v1664, %v1663
      %v2006 = vpack.c.b16 %v1666, %v1665
      %v2007 = vpack.c.b16 %v1668, %v1667
      %v2008 = vpack.c.b16 %v1670, %v1669
      %v2009 = vpack.c.b16 %v1672, %v1671
      %v2010 = vpack.c.b16 %v1674, %v1673
      %v2011 = vpack.c.b16 %v1676, %v1675
      %v2012 = vpack.c.b16 %v1678, %v1677
      %v2013 = vpack.c.b16 %v1680, %v1679
      %v2014 = vpack.c.b16 %v1682, %v1681
      %v2015 = vpack.c.b16 %v1684, %v1683
      %v2016 = vpack.c.b16 %v1686, %v1685
      %v2017 = vpack.c.b16 %v1688, %v1687
      %v2018 = vpack.c.b16 %v1690, %v1689
      %v2019 = vpack.c.b16 %v1692, %v1691
      %v2020 = vpack.c.b16 %v1694, %v1693
      %v2021 = vpack.c.b16 %v1696, %v1695
      %v2022 = vpack.c.b16 %v1698, %v1697
      %v2023 = vpack.c.b16 %v1700, %v1699
      %v2024 = vpack.c.b16 %v1702, %v1701
      %v2025 = vpack.c.b16 %v1704, %v1703
      %v2026 = vpack.c.b16 %v1706, %v1705
      %v2027 = vpack.c.b16 %v1708, %v1707
      %v2028 = vpack.c.b16 %v1710, %v1709
      %v2029 = vpack.c.b16 %v1712, %v1711
      %v2030 = vpack.c.b16 %v1714, %v1713
      %v2031 = vpack.c.b16 %v1716, %v1715
      %v2032 = vpack.c.b16 %v1718, %v1717
      %v2033 = vpack.c.b16 %v1720, %v1719
      %v2034 = vpack.c.b16 %v1722, %v1721
      %v2035 = vpack.c.b16 %v1724, %v1723
      %v2036 = vpack.c.b16 %v1726, %v1725
      %v2037 = vpack.c.b16 %v1728, %v1727
      %v2038 = vpack.c.b16 %v1730, %v1729
      %v2039 = vpack.c.b16 %v1732, %v1731
      %v2040 = vpack.c.b16 %v1734, %v1733
      %v2041 = vpack.c.b16 %v1736, %v1735
      %v2042 = vpack.c.b16 %v1738, %v1737
      %v2043 = vpack.c.b16 %v1740, %v1739
      %v2044 = vpack.c.b16 %v1742, %v1741
      %v2045 = vpack.c.b16 %v1744, %v1743
      %v2046 = vpack.c.b16 %v1746, %v1745
      %v2047 = vpack.c.b16 %v1748, %v1747
      %v2048 = vpack.c.b16 %v1750, %v1749
      %v2049 = vpack.c.b16 %v1752, %v1751
      %v2050 = vpack.c.b16 %v1754, %v1753
      %v2051 = vpack.c.b16 %v1756, %v1755
      %v2052 = vpack.c.b16 %v1758, %v1757
      %v2053 = vpack.c.b16 %v1760, %v1759
      %v2054 = vpack.c.b16 %v1762, %v1761
      %v2055 = vpack.c.b16 %v1764, %v1763
      %v2056 = vpack.c.b16 %v1766, %v1765
      %v2057 = vpack.c.b16 %v1768, %v1767
      %v2058 = vpack.c.b16 %v1770, %v1769
      %v2059 = vpack.c.b16 %v1772, %v1771
      %v2060 = vpack.c.b16 %v1774, %v1773
      %v2061 = vpack.c.b16 %v1776, %v1775
      %v2062 = vpack.c.b16 %v1778, %v1777
      %v2063 = vpack.c.b16 %v1780, %v1779
      %v2064 = vpack.c.b16 %v1782, %v1781
      %v2065 = vpack.c.b16 %v1784, %v1783
      %v2066 = vpack.c.b16 %v1786, %v1785
      %v2067 = vpack.c.b16 %v1788, %v1787
      %v2068 = vpack.c.b16 %v1790, %v1789
      %v2069 = vpack.c.b16 %v1792, %v1791
      %v2070 = vpack.c.b16 %v1794, %v1793
      %v2071 = vpack.c.b16 %v1796, %v1795
      %v2072 = vpack.c.b16 %v1798, %v1797
      %v2073 = vpack.c.b16 %v1800, %v1799
      %v2074 = vpack.c.b16 %v1802, %v1801
      %v2075 = vpack.c.b16 %v1804, %v1803
      %v2076 = vpack.c.b16 %v1806, %v1805
      %v2077 = vpack.c.b16 %v1808, %v1807
      %v2078 = vpack.c.b16 %v1810, %v1809
      %v2079 = vpack.c.b16 %v1812, %v1811
      %v2080 = vpack.c.b16 %v1814, %v1813
      %v2081 = vpack.c.b16 %v1816, %v1815
      %v2082 = vpack.c.b16 %v1818, %v1817
      %v2083 = vpack.c.b16 %v1820, %v1819
      %v2084 = vpack.c.b16 %v1822, %v1821
      %v2085 = vpack.c.b16 %v1824, %v1823
      %v2086 = vpack.c.b16 %v1826, %v1825
      %v2087 = vpack.c.b16 %v1828, %v1827
      %v2088 = vpack.c.b16 %v1830, %v1829
      %v2089 = vpack.c.b16 %v1832, %v1831
      %v2090 = vpack.c.b16 %v1834, %v1833
      %2347 = vmatpush.bf16.msra.mxu0 %v1842
      %2348 = vmatpush.bf16.msra.mxu0 %v1841
      %2349 = vmatpush.bf16.msra.mxu0 %v1840
      %2350 = vmatpush.bf16.msra.mxu0 %v1839
      %2351 = vmatpush.bf16.msra.mxu0 %v1838
      %2352 = vmatpush.bf16.msra.mxu0 %v1837
      %2353 = vmatpush.bf16.msra.mxu0 %v1836
      %2354 = vmatpush.bf16.msra.mxu0 %v1835
      %2355 = vmatmul.bf16.gmra.mxu0 %v741
      %v2356 = vpop.f32.mrf.mxu0
      %v2357 = vadd.f32 0.0, %v2356
      %v2358 = vpop.f32.mrf.mxu0
      %2359 = vdwg.mxu0
      %2360 = vmatpush.bf16.msra.mxu0 %v1850
      %2361 = vmatpush.bf16.msra.mxu0 %v1849
      %2362 = vmatpush.bf16.msra.mxu0 %v1848
      %2363 = vmatpush.bf16.msra.mxu0 %v1847
      %2364 = vmatpush.bf16.msra.mxu0 %v1846
      %2365 = vmatpush.bf16.msra.mxu0 %v1845
      %2366 = vmatpush.bf16.msra.mxu0 %v1844
      %2367 = vmatpush.bf16.msra.mxu0 %v1843
      %2368 = vmatmul.bf16.gmra.mxu0 %v742
      %v2369 = vpop.f32.mrf.mxu0
      %v2370 = vadd.f32 %v2357, %v2369
      %v2371 = vpop.f32.mrf.mxu0
      %2372 = vdwg.mxu0
      %2373 = vmatpush.bf16.msra.mxu0 %v1858
      %2374 = vmatpush.bf16.msra.mxu0 %v1857
      %2375 = vmatpush.bf16.msra.mxu0 %v1856
      %2376 = vmatpush.bf16.msra.mxu0 %v1855
      %2377 = vmatpush.bf16.msra.mxu0 %v1854
      %2378 = vmatpush.bf16.msra.mxu0 %v1853
      %2379 = vmatpush.bf16.msra.mxu0 %v1852
      %2380 = vmatpush.bf16.msra.mxu0 %v1851
      %2381 = vmatmul.bf16.gmra.mxu0 %v743
      %v2382 = vpop.f32.mrf.mxu0
      %v2383 = vadd.f32 %v2370, %v2382
      %v2384 = vpop.f32.mrf.mxu0
      %2385 = vdwg.mxu0
      %2386 = vmatpush.bf16.msra.mxu0 %v1866
      %2387 = vmatpush.bf16.msra.mxu0 %v1865
      %2388 = vmatpush.bf16.msra.mxu0 %v1864
      %2389 = vmatpush.bf16.msra.mxu0 %v1863
      %2390 = vmatpush.bf16.msra.mxu0 %v1862
      %2391 = vmatpush.bf16.msra.mxu0 %v1861
      %2392 = vmatpush.bf16.msra.mxu0 %v1860
      %2393 = vmatpush.bf16.msra.mxu0 %v1859
      %2394 = vmatmul.bf16.gmra.mxu0 %v744
      %v2395 = vpop.f32.mrf.mxu0
      %v2396 = vadd.f32 %v2383, %v2395
      %v2397 = vpop.f32.mrf.mxu0
      %2398 = vdwg.mxu0
      %2399 = vmatpush.bf16.msra.mxu0 %v1874
      %2400 = vmatpush.bf16.msra.mxu0 %v1873
      %2401 = vmatpush.bf16.msra.mxu0 %v1872
      %2402 = vmatpush.bf16.msra.mxu0 %v1871
      %2403 = vmatpush.bf16.msra.mxu0 %v1870
      %2404 = vmatpush.bf16.msra.mxu0 %v1869
      %2405 = vmatpush.bf16.msra.mxu0 %v1868
      %2406 = vmatpush.bf16.msra.mxu0 %v1867
      %2407 = vmatmul.bf16.gmra.mxu0 %v745
      %v2408 = vpop.f32.mrf.mxu0
      %v2409 = vadd.f32 %v2396, %v2408
      %v2410 = vpop.f32.mrf.mxu0
      %2411 = vdwg.mxu0
      %2412 = vmatpush.bf16.msra.mxu0 %v1882
      %2413 = vmatpush.bf16.msra.mxu0 %v1881
      %2414 = vmatpush.bf16.msra.mxu0 %v1880
      %2415 = vmatpush.bf16.msra.mxu0 %v1879
      %2416 = vmatpush.bf16.msra.mxu0 %v1878
      %2417 = vmatpush.bf16.msra.mxu0 %v1877
      %2418 = vmatpush.bf16.msra.mxu0 %v1876
      %2419 = vmatpush.bf16.msra.mxu0 %v1875
      %2420 = vmatmul.bf16.gmra.mxu0 %v746
      %v2421 = vpop.f32.mrf.mxu0
      %v2422 = vadd.f32 %v2409, %v2421
      %v2423 = vpop.f32.mrf.mxu0
      %2424 = vdwg.mxu0
      %2425 = vmatpush.bf16.msra.mxu0 %v1890
      %2426 = vmatpush.bf16.msra.mxu0 %v1889
      %2427 = vmatpush.bf16.msra.mxu0 %v1888
      %2428 = vmatpush.bf16.msra.mxu0 %v1887
      %2429 = vmatpush.bf16.msra.mxu0 %v1886
      %2430 = vmatpush.bf16.msra.mxu0 %v1885
      %2431 = vmatpush.bf16.msra.mxu0 %v1884
      %2432 = vmatpush.bf16.msra.mxu0 %v1883
      %2433 = vmatmul.bf16.gmra.mxu0 %v747
      %v2434 = vpop.f32.mrf.mxu0
      %v2435 = vadd.f32 %v2422, %v2434
      %v2436 = vpop.f32.mrf.mxu0
      %2437 = vdwg.mxu0
      %2438 = vmatpush.bf16.msra.mxu0 %v1898
      %2439 = vmatpush.bf16.msra.mxu0 %v1897
      %2440 = vmatpush.bf16.msra.mxu0 %v1896
      %2441 = vmatpush.bf16.msra.mxu0 %v1895
      %2442 = vmatpush.bf16.msra.mxu0 %v1894
      %2443 = vmatpush.bf16.msra.mxu0 %v1893
      %2444 = vmatpush.bf16.msra.mxu0 %v1892
      %2445 = vmatpush.bf16.msra.mxu0 %v1891
      %2446 = vmatmul.bf16.gmra.mxu0 %v748
      %v2447 = vpop.f32.mrf.mxu0
      %v2448 = vadd.f32 %v2435, %v2447
      %v2449 = vpop.f32.mrf.mxu0
      %2450 = vdwg.mxu0
      %2451 = vmatpush.bf16.msra.mxu0 %v1906
      %2452 = vmatpush.bf16.msra.mxu0 %v1905
      %2453 = vmatpush.bf16.msra.mxu0 %v1904
      %2454 = vmatpush.bf16.msra.mxu0 %v1903
      %2455 = vmatpush.bf16.msra.mxu0 %v1902
      %2456 = vmatpush.bf16.msra.mxu0 %v1901
      %2457 = vmatpush.bf16.msra.mxu0 %v1900
      %2458 = vmatpush.bf16.msra.mxu0 %v1899
      %2459 = vmatmul.bf16.gmra.mxu0 %v751
      %v2460 = vpop.f32.mrf.mxu0
      %v2461 = vadd.f32 %v2448, %v2460
      %v2462 = vpop.f32.mrf.mxu0
      %2463 = vdwg.mxu0
      %2464 = vmatpush.bf16.msra.mxu0 %v1914
      %2465 = vmatpush.bf16.msra.mxu0 %v1913
      %2466 = vmatpush.bf16.msra.mxu0 %v1912
      %2467 = vmatpush.bf16.msra.mxu0 %v1911
      %2468 = vmatpush.bf16.msra.mxu0 %v1910
      %2469 = vmatpush.bf16.msra.mxu0 %v1909
      %2470 = vmatpush.bf16.msra.mxu0 %v1908
      %2471 = vmatpush.bf16.msra.mxu0 %v1907
      %2472 = vmatmul.bf16.gmra.mxu0 %v752
      %v2473 = vpop.f32.mrf.mxu0
      %v2474 = vadd.f32 %v2461, %v2473
      %v2475 = vpop.f32.mrf.mxu0
      %2476 = vdwg.mxu0
      %2477 = vmatpush.bf16.msra.mxu0 %v1922
      %2478 = vmatpush.bf16.msra.mxu0 %v1921
      %2479 = vmatpush.bf16.msra.mxu0 %v1920
      %2480 = vmatpush.bf16.msra.mxu0 %v1919
      %2481 = vmatpush.bf16.msra.mxu0 %v1918
      %2482 = vmatpush.bf16.msra.mxu0 %v1917
      %2483 = vmatpush.bf16.msra.mxu0 %v1916
      %2484 = vmatpush.bf16.msra.mxu0 %v1915
      %2485 = vmatmul.bf16.gmra.mxu0 %v753
      %v2486 = vpop.f32.mrf.mxu0
      %v2487 = vadd.f32 %v2474, %v2486
      %v2488 = vpop.f32.mrf.mxu0
      %2489 = vdwg.mxu0
      %2490 = vmatpush.bf16.msra.mxu0 %v1930
      %2491 = vmatpush.bf16.msra.mxu0 %v1929
      %2492 = vmatpush.bf16.msra.mxu0 %v1928
      %2493 = vmatpush.bf16.msra.mxu0 %v1927
      %2494 = vmatpush.bf16.msra.mxu0 %v1926
      %2495 = vmatpush.bf16.msra.mxu0 %v1925
      %2496 = vmatpush.bf16.msra.mxu0 %v1924
      %2497 = vmatpush.bf16.msra.mxu0 %v1923
      %2498 = vmatmul.bf16.gmra.mxu0 %v754
      %v2499 = vpop.f32.mrf.mxu0
      %v2500 = vadd.f32 %v2487, %v2499
      %v2501 = vpop.f32.mrf.mxu0
      %2502 = vdwg.mxu0
      %2503 = vmatpush.bf16.msra.mxu0 %v1938
      %2504 = vmatpush.bf16.msra.mxu0 %v1937
      %2505 = vmatpush.bf16.msra.mxu0 %v1936
      %2506 = vmatpush.bf16.msra.mxu0 %v1935
      %2507 = vmatpush.bf16.msra.mxu0 %v1934
      %2508 = vmatpush.bf16.msra.mxu0 %v1933
      %2509 = vmatpush.bf16.msra.mxu0 %v1932
      %2510 = vmatpush.bf16.msra.mxu0 %v1931
      %2511 = vmatmul.bf16.gmra.mxu0 %v755
      %v2512 = vpop.f32.mrf.mxu0
      %v2513 = vadd.f32 %v2500, %v2512
      %v2514 = vpop.f32.mrf.mxu0
      %2515 = vdwg.mxu0
      %2516 = vmatpush.bf16.msra.mxu0 %v1946
      %2517 = vmatpush.bf16.msra.mxu0 %v1945
      %2518 = vmatpush.bf16.msra.mxu0 %v1944
      %2519 = vmatpush.bf16.msra.mxu0 %v1943
      %2520 = vmatpush.bf16.msra.mxu0 %v1942
      %2521 = vmatpush.bf16.msra.mxu0 %v1941
      %2522 = vmatpush.bf16.msra.mxu0 %v1940
      %2523 = vmatpush.bf16.msra.mxu0 %v1939
      %2524 = vmatmul.bf16.gmra.mxu0 %v756
      %v2525 = vpop.f32.mrf.mxu0
      %v2526 = vadd.f32 %v2513, %v2525
      %v2527 = vpop.f32.mrf.mxu0
      %2528 = vdwg.mxu0
      %2529 = vmatpush.bf16.msra.mxu0 %v1954
      %2530 = vmatpush.bf16.msra.mxu0 %v1953
      %2531 = vmatpush.bf16.msra.mxu0 %v1952
      %2532 = vmatpush.bf16.msra.mxu0 %v1951
      %2533 = vmatpush.bf16.msra.mxu0 %v1950
      %2534 = vmatpush.bf16.msra.mxu0 %v1949
      %2535 = vmatpush.bf16.msra.mxu0 %v1948
      %2536 = vmatpush.bf16.msra.mxu0 %v1947
      %2537 = vmatmul.bf16.gmra.mxu0 %v757
      %v2538 = vpop.f32.mrf.mxu0
      %v2539 = vadd.f32 %v2526, %v2538
      %v2540 = vpop.f32.mrf.mxu0
      %2541 = vdwg.mxu0
      %2542 = vmatpush.bf16.msra.mxu0 %v1962
      %2543 = vmatpush.bf16.msra.mxu0 %v1961
      %2544 = vmatpush.bf16.msra.mxu0 %v1960
      %2545 = vmatpush.bf16.msra.mxu0 %v1959
      %2546 = vmatpush.bf16.msra.mxu0 %v1958
      %2547 = vmatpush.bf16.msra.mxu0 %v1957
      %2548 = vmatpush.bf16.msra.mxu0 %v1956
      %2549 = vmatpush.bf16.msra.mxu0 %v1955
      %2550 = vmatmul.bf16.gmra.mxu0 %v758
      %v2551 = vpop.f32.mrf.mxu0
      %v2552 = vadd.f32 %v2539, %v2551
      %v2553 = vpop.f32.mrf.mxu0
      %2554 = vdwg.mxu0
      %2555 = vmatpush.bf16.msra.mxu0 %v1970
      %2556 = vmatpush.bf16.msra.mxu0 %v1969
      %2557 = vmatpush.bf16.msra.mxu0 %v1968
      %2558 = vmatpush.bf16.msra.mxu0 %v1967
      %2559 = vmatpush.bf16.msra.mxu0 %v1966
      %2560 = vmatpush.bf16.msra.mxu0 %v1965
      %2561 = vmatpush.bf16.msra.mxu0 %v1964
      %2562 = vmatpush.bf16.msra.mxu0 %v1963
      %2563 = vmatmul.bf16.gmra.mxu0 %v761
      %v2564 = vpop.f32.mrf.mxu0
      %v2565 = vadd.f32 %v2552, %v2564
      %v2566 = vpop.f32.mrf.mxu0
      %2567 = vdwg.mxu0
      %2568 = vmatpush.bf16.msra.mxu0 %v1978
      %2569 = vmatpush.bf16.msra.mxu0 %v1977
      %2570 = vmatpush.bf16.msra.mxu0 %v1976
      %2571 = vmatpush.bf16.msra.mxu0 %v1975
      %2572 = vmatpush.bf16.msra.mxu0 %v1974
      %2573 = vmatpush.bf16.msra.mxu0 %v1973
      %2574 = vmatpush.bf16.msra.mxu0 %v1972
      %2575 = vmatpush.bf16.msra.mxu0 %v1971
      %2576 = vmatmul.bf16.gmra.mxu0 %v762
      %v2577 = vpop.f32.mrf.mxu0
      %v2578 = vadd.f32 %v2565, %v2577
      %v2579 = vpop.f32.mrf.mxu0
      %2580 = vdwg.mxu0
      %2581 = vmatpush.bf16.msra.mxu0 %v1986
      %2582 = vmatpush.bf16.msra.mxu0 %v1985
      %2583 = vmatpush.bf16.msra.mxu0 %v1984
      %2584 = vmatpush.bf16.msra.mxu0 %v1983
      %2585 = vmatpush.bf16.msra.mxu0 %v1982
      %2586 = vmatpush.bf16.msra.mxu0 %v1981
      %2587 = vmatpush.bf16.msra.mxu0 %v1980
      %2588 = vmatpush.bf16.msra.mxu0 %v1979
      %2589 = vmatmul.bf16.gmra.mxu0 %v763
      %v2590 = vpop.f32.mrf.mxu0
      %v2591 = vadd.f32 %v2578, %v2590
      %v2592 = vpop.f32.mrf.mxu0
      %2593 = vdwg.mxu0
      %2594 = vmatpush.bf16.msra.mxu0 %v1994
      %2595 = vmatpush.bf16.msra.mxu0 %v1993
      %2596 = vmatpush.bf16.msra.mxu0 %v1992
      %2597 = vmatpush.bf16.msra.mxu0 %v1991
      %2598 = vmatpush.bf16.msra.mxu0 %v1990
      %2599 = vmatpush.bf16.msra.mxu0 %v1989
      %2600 = vmatpush.bf16.msra.mxu0 %v1988
      %2601 = vmatpush.bf16.msra.mxu0 %v1987
      %2602 = vmatmul.bf16.gmra.mxu0 %v764
      %v2603 = vpop.f32.mrf.mxu0
      %v2604 = vadd.f32 %v2591, %v2603
      %v2605 = vpop.f32.mrf.mxu0
      %2606 = vdwg.mxu0
      %2607 = vmatpush.bf16.msra.mxu0 %v2002
      %2608 = vmatpush.bf16.msra.mxu0 %v2001
      %2609 = vmatpush.bf16.msra.mxu0 %v2000
      %2610 = vmatpush.bf16.msra.mxu0 %v1999
      %2611 = vmatpush.bf16.msra.mxu0 %v1998
      %2612 = vmatpush.bf16.msra.mxu0 %v1997
      %2613 = vmatpush.bf16.msra.mxu0 %v1996
      %2614 = vmatpush.bf16.msra.mxu0 %v1995
      %2615 = vmatmul.bf16.gmra.mxu0 %v765
      %v2616 = vpop.f32.mrf.mxu0
      %v2617 = vadd.f32 %v2604, %v2616
      %v2618 = vpop.f32.mrf.mxu0
      %2619 = vdwg.mxu0
      %2620 = vmatpush.bf16.msra.mxu0 %v2010
      %2621 = vmatpush.bf16.msra.mxu0 %v2009
      %2622 = vmatpush.bf16.msra.mxu0 %v2008
      %2623 = vmatpush.bf16.msra.mxu0 %v2007
      %2624 = vmatpush.bf16.msra.mxu0 %v2006
      %2625 = vmatpush.bf16.msra.mxu0 %v2005
      %2626 = vmatpush.bf16.msra.mxu0 %v2004
      %2627 = vmatpush.bf16.msra.mxu0 %v2003
      %2628 = vmatmul.bf16.gmra.mxu0 %v766
      %v2629 = vpop.f32.mrf.mxu0
      %v2630 = vadd.f32 %v2617, %v2629
      %v2631 = vpop.f32.mrf.mxu0
      %2632 = vdwg.mxu0
      %2633 = vmatpush.bf16.msra.mxu0 %v2018
      %2634 = vmatpush.bf16.msra.mxu0 %v2017
      %2635 = vmatpush.bf16.msra.mxu0 %v2016
      %2636 = vmatpush.bf16.msra.mxu0 %v2015
      %2637 = vmatpush.bf16.msra.mxu0 %v2014
      %2638 = vmatpush.bf16.msra.mxu0 %v2013
      %2639 = vmatpush.bf16.msra.mxu0 %v2012
      %2640 = vmatpush.bf16.msra.mxu0 %v2011
      %2641 = vmatmul.bf16.gmra.mxu0 %v767
      %v2642 = vpop.f32.mrf.mxu0
      %v2643 = vadd.f32 %v2630, %v2642
      %v2644 = vpop.f32.mrf.mxu0
      %2645 = vdwg.mxu0
      %2646 = vmatpush.bf16.msra.mxu0 %v2026
      %2647 = vmatpush.bf16.msra.mxu0 %v2025
      %2648 = vmatpush.bf16.msra.mxu0 %v2024
      %2649 = vmatpush.bf16.msra.mxu0 %v2023
      %2650 = vmatpush.bf16.msra.mxu0 %v2022
      %2651 = vmatpush.bf16.msra.mxu0 %v2021
      %2652 = vmatpush.bf16.msra.mxu0 %v2020
      %2653 = vmatpush.bf16.msra.mxu0 %v2019
      %2654 = vmatmul.bf16.gmra.mxu0 %v768
      %v2655 = vpop.f32.mrf.mxu0
      %v2656 = vadd.f32 %v2643, %v2655
      %v2657 = vpop.f32.mrf.mxu0
      %2658 = vdwg.mxu0
      %2659 = vmatpush.bf16.msra.mxu0 %v2034
      %2660 = vmatpush.bf16.msra.mxu0 %v2033
      %2661 = vmatpush.bf16.msra.mxu0 %v2032
      %2662 = vmatpush.bf16.msra.mxu0 %v2031
      %2663 = vmatpush.bf16.msra.mxu0 %v2030
      %2664 = vmatpush.bf16.msra.mxu0 %v2029
      %2665 = vmatpush.bf16.msra.mxu0 %v2028
      %2666 = vmatpush.bf16.msra.mxu0 %v2027
      %2667 = vmatmul.bf16.gmra.mxu0 %v771
      %v2668 = vpop.f32.mrf.mxu0
      %v2669 = vadd.f32 %v2656, %v2668
      %v2670 = vpop.f32.mrf.mxu0
      %2671 = vdwg.mxu0
      %2672 = vmatpush.bf16.msra.mxu0 %v2042
      %2673 = vmatpush.bf16.msra.mxu0 %v2041
      %2674 = vmatpush.bf16.msra.mxu0 %v2040
      %2675 = vmatpush.bf16.msra.mxu0 %v2039
      %2676 = vmatpush.bf16.msra.mxu0 %v2038
      %2677 = vmatpush.bf16.msra.mxu0 %v2037
      %2678 = vmatpush.bf16.msra.mxu0 %v2036
      %2679 = vmatpush.bf16.msra.mxu0 %v2035
      %2680 = vmatmul.bf16.gmra.mxu0 %v772
      %v2681 = vpop.f32.mrf.mxu0
      %v2682 = vadd.f32 %v2669, %v2681
      %v2683 = vpop.f32.mrf.mxu0
      %2684 = vdwg.mxu0
      %2685 = vmatpush.bf16.msra.mxu0 %v2050
      %2686 = vmatpush.bf16.msra.mxu0 %v2049
      %2687 = vmatpush.bf16.msra.mxu0 %v2048
      %2688 = vmatpush.bf16.msra.mxu0 %v2047
      %2689 = vmatpush.bf16.msra.mxu0 %v2046
      %2690 = vmatpush.bf16.msra.mxu0 %v2045
      %2691 = vmatpush.bf16.msra.mxu0 %v2044
      %2692 = vmatpush.bf16.msra.mxu0 %v2043
      %2693 = vmatmul.bf16.gmra.mxu0 %v773
      %v2694 = vpop.f32.mrf.mxu0
      %v2695 = vadd.f32 %v2682, %v2694
      %v2696 = vpop.f32.mrf.mxu0
      %2697 = vdwg.mxu0
      %2698 = vmatpush.bf16.msra.mxu0 %v2058
      %2699 = vmatpush.bf16.msra.mxu0 %v2057
      %2700 = vmatpush.bf16.msra.mxu0 %v2056
      %2701 = vmatpush.bf16.msra.mxu0 %v2055
      %2702 = vmatpush.bf16.msra.mxu0 %v2054
      %2703 = vmatpush.bf16.msra.mxu0 %v2053
      %2704 = vmatpush.bf16.msra.mxu0 %v2052
      %2705 = vmatpush.bf16.msra.mxu0 %v2051
      %2706 = vmatmul.bf16.gmra.mxu0 %v774
      %v2707 = vpop.f32.mrf.mxu0
      %v2708 = vadd.f32 %v2695, %v2707
      %v2709 = vpop.f32.mrf.mxu0
      %2710 = vdwg.mxu0
      %2711 = vmatpush.bf16.msra.mxu0 %v2066
      %2712 = vmatpush.bf16.msra.mxu0 %v2065
      %2713 = vmatpush.bf16.msra.mxu0 %v2064
      %2714 = vmatpush.bf16.msra.mxu0 %v2063
      %2715 = vmatpush.bf16.msra.mxu0 %v2062
      %2716 = vmatpush.bf16.msra.mxu0 %v2061
      %2717 = vmatpush.bf16.msra.mxu0 %v2060
      %2718 = vmatpush.bf16.msra.mxu0 %v2059
      %2719 = vmatmul.bf16.gmra.mxu0 %v775
      %v2720 = vpop.f32.mrf.mxu0
      %v2721 = vadd.f32 %v2708, %v2720
      %v2722 = vpop.f32.mrf.mxu0
      %2723 = vdwg.mxu0
      %2724 = vmatpush.bf16.msra.mxu0 %v2074
      %2725 = vmatpush.bf16.msra.mxu0 %v2073
      %2726 = vmatpush.bf16.msra.mxu0 %v2072
      %2727 = vmatpush.bf16.msra.mxu0 %v2071
      %2728 = vmatpush.bf16.msra.mxu0 %v2070
      %2729 = vmatpush.bf16.msra.mxu0 %v2069
      %2730 = vmatpush.bf16.msra.mxu0 %v2068
      %2731 = vmatpush.bf16.msra.mxu0 %v2067
      %2732 = vmatmul.bf16.gmra.mxu0 %v776
      %v2733 = vpop.f32.mrf.mxu0
      %v2734 = vadd.f32 %v2721, %v2733
      %v2735 = vpop.f32.mrf.mxu0
      %2736 = vdwg.mxu0
      %2737 = vmatpush.bf16.msra.mxu0 %v2082
      %2738 = vmatpush.bf16.msra.mxu0 %v2081
      %2739 = vmatpush.bf16.msra.mxu0 %v2080
      %2740 = vmatpush.bf16.msra.mxu0 %v2079
      %2741 = vmatpush.bf16.msra.mxu0 %v2078
      %2742 = vmatpush.bf16.msra.mxu0 %v2077
      %2743 = vmatpush.bf16.msra.mxu0 %v2076
      %2744 = vmatpush.bf16.msra.mxu0 %v2075
      %2745 = vmatmul.bf16.gmra.mxu0 %v777
      %v2746 = vpop.f32.mrf.mxu0
      %v2747 = vadd.f32 %v2734, %v2746
      %v2748 = vpop.f32.mrf.mxu0
      %2749 = vdwg.mxu0
      %2750 = vmatpush.bf16.msra.mxu0 %v2090
      %2751 = vmatpush.bf16.msra.mxu0 %v2089
      %2752 = vmatpush.bf16.msra.mxu0 %v2088
      %2753 = vmatpush.bf16.msra.mxu0 %v2087
      %2754 = vmatpush.bf16.msra.mxu0 %v2086
      %2755 = vmatpush.bf16.msra.mxu0 %v2085
      %2756 = vmatpush.bf16.msra.mxu0 %v2084
      %2757 = vmatpush.bf16.msra.mxu0 %v2083
      %2758 = vmatmul.bf16.gmra.mxu0 %v778
      %v2759 = vpop.f32.mrf.mxu0
      %v2760 = vadd.f32 %v2747, %v2759
      %v2761 = vpop.f32.mrf.mxu0
      %2762 = vdwg.mxu0
      %v2763 = vadd.f32 %v222, %v2760
      %vm2764 = vcmask 25600
      %2765 = vst.msk [vmem:[#allocation2] sm:$0x3] %vm2764, %v2763
      %v2766 = vld [vmem:[#allocation2] sm:$0x3]
      %v2767 = vmul.f32 %v2766, 0.0625
      %v2768 = vld [vmem:[%s2] sm:$0x1]
      %v2770 = vperm.slane %v2768, 0
      %v2772 = vadd.f32 %v2767, %v2770
      %2773 = vst.msk [vmem:[%s215] sm:$0x3] %vm2764, %v2772
      %p2774 = scmp.lt.s32.totalorder %s18, 0
      %s2775 = scalar_select %p2774, %s18, 0
      %s2776 = smul.addr %s2775, 2
      %s2777 = scalar_lea.vmem %s3, %s2776
      // Predicated region
      $region37: #{matrot_ge_heads.1} parent=31 // pred_check
        %p2778 = pneg %p119
      $region38: #{matrot_ge_heads.1} parent=31 // pred_check_branch
        %2780 = sbr.rel (%p2778) target = $region40
      $region39: #{matrot_ge_heads.1} parent=31 // pred_region
        _
      $region40: #{matrot_ge_heads.1} parent=31 // pred_fallthru
        _
      // Predicated region
      $region41: #{matrot_ge_heads.1} parent=31 // pred_check
        %p2781 = pneg %p119
      $region42: #{matrot_ge_heads.1} parent=31 // pred_check_branch
        %2783 = sbr.rel (%p2781) target = $region44
      $region43: #{matrot_ge_heads.1} parent=31 // pred_region
        %p2784 = scmp.lt.s32.totalorder %s18, 0
        %s2785 = scalar_select %p2784, %s18, 0
        %s2786 = smul.addr %s2785, 2
        %s2787 = scalar_lea.vmem %s3, %s2786
      $region44: #{matrot_ge_heads.1} parent=31 // pred_fallthru
        _
    $region32: #{matrot_ge_heads.1} parent=5 // pred_fallthru
      _
    %p2788 = scmp.le.s32.totalorder 2, %s9
    // Predicated region
    $region45: #{matrot_ge_heads.1} parent=5 // pred_check
      %p2789 = pneg %p2788
    $region46: #{matrot_ge_heads.1} parent=5 // pred_check_branch
      %2791 = sbr.rel (%p2789) target = $region48
    $region47: #{matrot_ge_heads.1} parent=5 // pred_region
      %s2792 = ssub.s32 %s9, 2
    $region48: #{matrot_ge_heads.1} parent=5 // pred_fallthru
      _
  $region6: #{matrot_ge_heads.1} parent=0 // loop_footer
    %s13 = sadd.s32 1, %s9
  $region7: #{matrot_ge_heads.1} parent=0 // loop_footer_branch
    %8 = sbr.rel target = $region3
  $region8: #{matrot_ge_heads.1} parent=0 // loop_exit
    _

</llo_original>
